<compile_context>
chip_gen: v7x
topology: tpu7x:2x2x1
jax: 0.10.0
libtpu: 0.0.40
codegen_flags: <defaults>
</compile_context>

<pallas_src>
import math
from functools import partial

import numpy as np
import jax
import jax.numpy as jnp
from jax.experimental import pallas as pl
from jax.experimental.pallas import tpu as pltpu

N_QUBITS = 4
N_LAYERS = 1
KSIZE = 4          # kernel_size = n_qubits
STRIDE = 2
TM, TN = 8, 128    # one (sublane, lane) vreg per amplitude
BLK = TM * TN      # samples per (8,128) tile
U_MAX = 8          # (8,128) sample tiles processed per grid step


def _bit(b, w):    # wire 0 = most-significant bit (PennyLane default.qubit)
    return (b >> (N_QUBITS - 1 - w)) & 1


def _tensorcores_per_chip():
    """2 TensorCores per chip on v7x, otherwise 1 (v5e / v6e)."""
    try:
        kind = jax.devices()[0].device_kind.lower()
    except Exception:
        return 1
    return 2 if ("v7" in kind or "7x" in kind) else 1


# ----------------------------- Pallas kernel --------------------------------
def _quanv_kernel(cs_ref, cphi_ref, sphi_ref, cz_ref, sx_ref, out_ref, *, U):
    """cs_ref : (32, U*8, 128) VMEM  cos (ch 0..15) / sin (ch 16..31) of the
                half data-encoding angles (precomputed in the wrapper).
       cphi/sphi : (16,) SMEM  cos/sin of the combined diagonal CRZ-ring phase
                   per basis state (all 4 CRZ gates are diagonal -> commute).
       cz/sx : (4,) SMEM  Heisenberg readout scalars cos(theta_w)/16 and
               2*sin(theta_w)/16 (deferred 1/16 normalization folded in).
       out_ref : (4, U*8, 128) VMEM  PauliZ expectation values."""
    # Hoist ALL SMEM scalar reads out of the sample-tile loop (Mosaic does not
    # CSE them across scf.for iterations).
    cphi = [cphi_ref[b] for b in range(16)]
    sphi = [sphi_ref[b] for b in range(16)]
    cz = [cz_ref[q] for q in range(N_QUBITS)]
    sx = [sx_ref[q] for q in range(N_QUBITS)]

    @pl.loop(0, U)          # not unrolled: keeps live ranges bounded per tile
    def _(u):
        row = pl.multiple_of(u * TM, TM)
        rows = pl.ds(row, TM)

        def cs(idx):        # (cos, sin) of half the idx-th encoding angle
            return cs_ref[idx, rows, :], cs_ref[idx + 16, rows, :]

        # ---- product-state data encoding ------------------------------------
        # Qubits are unentangled until the CRZ ring: evolve 4 independent
        # 2-amplitude states.  H|0> = (1,1)/sqrt(2); the 1/sqrt(2) per qubit is
        # deferred (folded into cz/sx), and the first RZ is specialized against
        # the known real (1,1) state.
        qr = [None] * N_QUBITS
        qi = [None] * N_QUBITS
        for q in range(N_QUBITS):
            c0, s0 = cs(q * 5)                 # gate 0 is always RZ
            r0, r1 = c0, c0
            i0, i1 = -s0, s0
            for i in range(1, 5):              # var_per_qubit = 16 // 4 + 1 = 5
                idx = q * 5 + i
                if idx >= 16:
                    break
                c, s = cs(idx)
                if i % 2 == 0:
                    # RZ(t): a0 *= e^{-it/2},  a1 *= e^{+it/2}
                    r0, i0, r1, i1 = (c * r0 + s * i0, c * i0 - s * r0,
                                      c * r1 - s * i1, c * i1 + s * r1)
                else:
                    # RY(t): [[c, -s], [s, c]] on (a0, a1)   (c, s of t/2)
                    r0, r1, i0, i1 = (c * r0 - s * r1, s * r0 + c * r1,
                                      c * i0 - s * i1, s * i0 + c * i1)
            qr[q] = [r0, r1]
            qi[q] = [i0, i1]

        # ---- Kronecker product, fused with the combined CRZ-ring diagonal ----
        def kron2(qa, qb):
            pr, pi = [], []
            for ba in range(2):
                for bb in range(2):
                    ra, ia = qr[qa][ba], qi[qa][ba]
                    rb, ib = qr[qb][bb], qi[qb][bb]
                    pr.append(ra * rb - ia * ib)
                    pi.append(ra * ib + ia * rb)
            return pr, pi

        pr01, pi01 = kron2(0, 1)
        pr23, pi23 = kron2(2, 3)

        re = [None] * 16
        im = [None] * 16
        for b in range(16):
            hi, lo = b >> 2, b & 3
            kr = pr01[hi] * pr23[lo] - pi01[hi] * pi23[lo]
            ki = pr01[hi] * pi23[lo] + pi01[hi] * pr23[lo]
            re[b] = cphi[b] * kr - sphi[b] * ki
            im[b] = sphi[b] * kr + cphi[b] * ki

        # ---- Heisenberg-picture readout --------------------------------------
        # RY(t)^dag Z RY(t) = cos(t) Z - sin(t) X, so
        #   <Z_w>_final = cz[w] * Zraw_w - sx[w] * Xraw_w
        # with Xraw_w = sum over the 8 pairs (b, b^m_w) of Re(a_b* a_{b^m_w})
        # (the factor 2 of <X> and the 1/16 normalization live in cz/sx).
        xw = []
        for w in range(N_QUBITS):
            m = 1 << (N_QUBITS - 1 - w)
            acc = None
            for b0 in range(16):
                if b0 & m:
                    continue
                b1 = b0 | m
                t = re[b0] * re[b1] + im[b0] * im[b1]
                acc = t if acc is None else acc + t
            xw.append(acc)

        # Walsh/butterfly partial-sum tree of |amp|^2 -> the 4 Zraw coefficients.
        lvl = [re[b] * re[b] + im[b] * im[b] for b in range(16)]
        zraw = [None] * N_QUBITS
        for w in range(N_QUBITS - 1, -1, -1):
            half_n = len(lvl) // 2
            diffs = [lvl[2 * k] - lvl[2 * k + 1] for k in range(half_n)]
            d = diffs[0]
            for t in diffs[1:]:
                d = d + t
            zraw[w] = d
            if w > 0:
                lvl = [lvl[2 * k] + lvl[2 * k + 1] for k in range(half_n)]

        for w in range(N_QUBITS):
            out_ref[w, rows, :] = cz[w] * zraw[w] - sx[w] * xw[w]


# ------------------------------- wrapper -------------------------------------
def quanv2d_forward(X, weights):
    """X: (bs, 1, 14, 14) float32 (NCHW).  weights: (n_layers, 2*n_qubits).
       Returns (bs, 4, 6, 6) float32 — identical semantics to Quanv2d.forward."""
    assert X.ndim == 4
    bs = X.shape[0]
    X = X.astype(jnp.float32)

    # patch extraction: one XLA op (NCHW default dimension numbers), output
    # channel k = flattened (c, kh, kw) patch position == torch.flatten order.
    patches = jax.lax.conv_general_dilated_patches(
        X, filter_shape=(KSIZE, KSIZE), window_strides=(STRIDE, STRIDE),
        padding='VALID')                                  # (bs, C*K*K, 6, 6)
    n_feat = patches.shape[1]
    P = patches.shape[2] * patches.shape[3]
    assert n_feat == 16, "circuit encodes exactly 16 values (C=1, 4x4 patch)"
    assert P * N_QUBITS == 144, "forward reshapes to (bs, 4, 6, 6) -> 36 patches"

    N = bs * P
    # angle-major layout (16, N); sample s -> (row s//128, lane s%128).
    ang = jnp.transpose(patches.reshape(bs, 16, P), (1, 0, 2)).reshape(16, N)
    # Precompute cos/sin of the half angles here: the TPU EUP has no sin/cos,
    # so doing it in-kernel would expand to VALU polynomials.  XLA fuses this
    # with the patch transpose/pad.
    half = ang * 0.5
    cs = jnp.concatenate([jnp.cos(half), jnp.sin(half)], axis=0)   # (32, N)

    # ---- generation-aware tile / grid sizing --------------------------------
    n_tiles = -(-N // BLK)
    num_tc = _tensorcores_per_chip()
    U = min(U_MAX, n_tiles)
    if num_tc > 1 and n_tiles > 1:
        # v7x: prefer the largest U whose grid size is a multiple of the core
        # count so both TensorCores get equal tile counts.
        balanced = [u for u in range(1, U + 1)
                    if (-(-n_tiles // u)) % num_tc == 0]
        if balanced:
            U = max(balanced)
    NB = -(-n_tiles // U)
    Npad = NB * U * BLK
    cs = jnp.pad(cs, ((0, 0), (0, Npad - N))).reshape(32, Npad // TN, TN)

    # circuit weights -> SMEM scalars.  The 4 CRZ gates are diagonal and commute:
    # collapse them into one phase phi_b per basis state b.
    w = weights.reshape(-1).astype(jnp.float32)            # (8,)
    sgn = np.zeros((16, N_QUBITS), dtype=np.float32)
    for b in range(16):
        for q in range(N_QUBITS):
            ctrl, tgt = q, (q + 1) % N_QUBITS
            if _bit(b, ctrl):
                sgn[b, q] = 1.0 if _bit(b, tgt) else -1.0
    phi = jnp.asarray(sgn) @ (w[:N_QUBITS] * 0.5)          # (16,)
    cphi, sphi = jnp.cos(phi), jnp.sin(phi)
    # Heisenberg readout scalars: RY^dag Z RY = cos(t) Z - sin(t) X, with the
    # deferred 1/16 amplitude normalization and the 2x of <X> folded in.
    theta = w[N_QUBITS:]
    cz = jnp.cos(theta) * (1.0 / 16.0)
    sx = jnp.sin(theta) * (2.0 / 16.0)

    cost = pl.CostEstimate(flops=700 * Npad,
                           transcendentals=0,
                           bytes_accessed=(32 + N_QUBITS) * 4 * Npad + 40 * 4)

    out = pl.pallas_call(
        partial(_quanv_kernel, U=U),
        out_shape=jax.ShapeDtypeStruct((N_QUBITS, Npad // TN, TN), jnp.float32),
        grid=(NB,),
        in_specs=[
            pl.BlockSpec((32, U * TM, TN), lambda n: (0, n, 0)),
            pl.BlockSpec(memory_space=pltpu.MemorySpace.SMEM),
            pl.BlockSpec(memory_space=pltpu.MemorySpace.SMEM),
            pl.BlockSpec(memory_space=pltpu.MemorySpace.SMEM),
            pl.BlockSpec(memory_space=pltpu.MemorySpace.SMEM),
        ],
        out_specs=pl.BlockSpec((N_QUBITS, U * TM, TN), lambda n: (0, n, 0)),
        compiler_params=pltpu.CompilerParams(dimension_semantics=("parallel",)),
        cost_estimate=cost,
    )(cs, cphi, sphi, cz, sx)

    expvals = out.reshape(N_QUBITS, Npad)[:, :N].T         # (N, 4)
    expvals = expvals.reshape(bs, P, N_QUBITS)             # matches torch.cat(XL, 1)
    return expvals.reshape(bs, P * N_QUBITS).reshape(bs, N_QUBITS, 6, 6)


# --------------------------- numpy reference ---------------------------------
def _reference_forward(X, weights):
    X = np.asarray(X, dtype=np.float64)
    W = np.asarray(weights, dtype=np.float64).reshape(-1)
    bs = X.shape[0]
    I2 = np.eye(2, dtype=complex)
    H = np.array([[1, 1], [1, -1]], dtype=complex) / np.sqrt(2.0)
    P0 = np.diag([1.0, 0.0]).astype(complex)
    P1 = np.diag([0.0, 1.0]).astype(complex)
    Z = np.diag([1.0, -1.0]).astype(complex)

    def RZ(t):
        return np.diag([np.exp(-1j * t / 2), np.exp(1j * t / 2)])

    def RY(t):
        c, s = np.cos(t / 2), np.sin(t / 2)
        return np.array([[c, -s], [s, c]], dtype=complex)

    def embed(g, w):
        ops = [I2] * 4
        ops[w] = g
        out = ops[0]
        for o in ops[1:]:
            out = np.kron(out, o)
        return out

    def run_circuit(inputs):
        psi = np.zeros(16, dtype=complex)
        psi[0] = 1.0
        enc = ['RZ', 'RY'] * 3
        for q in range(4):
            psi = embed(H, q) @ psi
            for i in range(5):
                idx = q * 5 + i
                if idx < 16:
                    g = RZ(inputs[idx]) if enc[i] == 'RZ' else RY(inputs[idx])
                    psi = embed(g, q) @ psi
        for q in range(4):
            ctrl, tgt = q, (q + 1) % 4
            op = embed(P0, ctrl) + embed(P1, ctrl) @ embed(RZ(W[q]), tgt)
            psi = op @ psi
        for q in range(4):
            psi = embed(RY(W[4 + q]), q) @ psi
        return np.array([np.real(psi.conj() @ (embed(Z, w) @ psi)) for w in range(4)])

    outs = []
    for i in range(0, X.shape[2] - 2, STRIDE):
        for j in range(0, X.shape[3] - 2, STRIDE):
            patch = X[:, :, i:i + KSIZE, j:j + KSIZE].reshape(bs, -1)
            outs.append(np.stack([run_circuit(patch[b]) for b in range(bs)], axis=0))
    flat = np.concatenate(outs, axis=1)
    return flat.reshape(bs, 4, 6, 6)


# --------------------------------- main ---------------------------------------
if __name__ == "__main__":
    key = jax.random.PRNGKey(0)
    kx, kw = jax.random.split(key)

    # bs=2, C=1, H=W=14 -> 36 patches of 4x4 with stride 2, output (2, 4, 6, 6)
    X = jax.random.normal(kx, (2, 1, 14, 14), dtype=jnp.float32)
    weights = jax.random.uniform(kw, (N_LAYERS, 2 * N_QUBITS),
                                 minval=0.0, maxval=2.0 * math.pi,
                                 dtype=jnp.float32)

    Y = jax.block_until_ready(quanv2d_forward(X, weights))
    assert Y.shape == (2, 4, 6, 6)

    Y_ref = _reference_forward(np.asarray(X), np.asarray(weights))
    np.testing.assert_allclose(np.asarray(Y), Y_ref, rtol=1e-4, atol=1e-4)

    print("KERNEL_OK")
</pallas_src>

<mosaic_0001>
module attributes {stable_mosaic.version = 11 : i64} {
  func.func @_quanv_kernel(%arg0: i32, %arg1: memref<32x8x128xf32, #tpu.memory_space<vmem>>, %arg2: memref<16xf32, #tpu.memory_space<smem>>, %arg3: memref<16xf32, #tpu.memory_space<smem>>, %arg4: memref<4xf32, #tpu.memory_space<smem>>, %arg5: memref<4xf32, #tpu.memory_space<smem>>, %arg6: memref<4x8x128xf32, #tpu.memory_space<vmem>>) attributes {dimension_semantics = [#tpu.dimension_semantics<parallel>], iteration_bounds = array<i64: 1>, scalar_prefetch = 0 : i64, scratch_operands = 0 : i64, tpu.core_type = #tpu.core_type<tc>, window_params = [{transform_indices = @transform_0, window_bounds = array<i64: 32, 8, 128>}, {transform_indices = @transform_1, window_bounds = array<i64: 16>}, {transform_indices = @transform_2, window_bounds = array<i64: 16>}, {transform_indices = @transform_3, window_bounds = array<i64: 4>}, {transform_indices = @transform_4, window_bounds = array<i64: 4>}, {transform_indices = @transform_5, window_bounds = array<i64: 4, 8, 128>}]} {
    %c0 = arith.constant 0 : index
    %0 = memref.load %arg2[%c0] : memref<16xf32, #tpu.memory_space<smem>>
    %c1 = arith.constant 1 : index
    %1 = memref.load %arg2[%c1] : memref<16xf32, #tpu.memory_space<smem>>
    %c2 = arith.constant 2 : index
    %2 = memref.load %arg2[%c2] : memref<16xf32, #tpu.memory_space<smem>>
    %c3 = arith.constant 3 : index
    %3 = memref.load %arg2[%c3] : memref<16xf32, #tpu.memory_space<smem>>
    %c4 = arith.constant 4 : index
    %4 = memref.load %arg2[%c4] : memref<16xf32, #tpu.memory_space<smem>>
    %c5 = arith.constant 5 : index
    %5 = memref.load %arg2[%c5] : memref<16xf32, #tpu.memory_space<smem>>
    %c6 = arith.constant 6 : index
    %6 = memref.load %arg2[%c6] : memref<16xf32, #tpu.memory_space<smem>>
    %c7 = arith.constant 7 : index
    %7 = memref.load %arg2[%c7] : memref<16xf32, #tpu.memory_space<smem>>
    %c8 = arith.constant 8 : index
    %8 = memref.load %arg2[%c8] : memref<16xf32, #tpu.memory_space<smem>>
    %c9 = arith.constant 9 : index
    %9 = memref.load %arg2[%c9] : memref<16xf32, #tpu.memory_space<smem>>
    %c10 = arith.constant 10 : index
    %10 = memref.load %arg2[%c10] : memref<16xf32, #tpu.memory_space<smem>>
    %c11 = arith.constant 11 : index
    %11 = memref.load %arg2[%c11] : memref<16xf32, #tpu.memory_space<smem>>
    %c12 = arith.constant 12 : index
    %12 = memref.load %arg2[%c12] : memref<16xf32, #tpu.memory_space<smem>>
    %c13 = arith.constant 13 : index
    %13 = memref.load %arg2[%c13] : memref<16xf32, #tpu.memory_space<smem>>
    %c14 = arith.constant 14 : index
    %14 = memref.load %arg2[%c14] : memref<16xf32, #tpu.memory_space<smem>>
    %c15 = arith.constant 15 : index
    %15 = memref.load %arg2[%c15] : memref<16xf32, #tpu.memory_space<smem>>
    %c0_0 = arith.constant 0 : index
    %16 = memref.load %arg3[%c0_0] : memref<16xf32, #tpu.memory_space<smem>>
    %c1_1 = arith.constant 1 : index
    %17 = memref.load %arg3[%c1_1] : memref<16xf32, #tpu.memory_space<smem>>
    %c2_2 = arith.constant 2 : index
    %18 = memref.load %arg3[%c2_2] : memref<16xf32, #tpu.memory_space<smem>>
    %c3_3 = arith.constant 3 : index
    %19 = memref.load %arg3[%c3_3] : memref<16xf32, #tpu.memory_space<smem>>
    %c4_4 = arith.constant 4 : index
    %20 = memref.load %arg3[%c4_4] : memref<16xf32, #tpu.memory_space<smem>>
    %c5_5 = arith.constant 5 : index
    %21 = memref.load %arg3[%c5_5] : memref<16xf32, #tpu.memory_space<smem>>
    %c6_6 = arith.constant 6 : index
    %22 = memref.load %arg3[%c6_6] : memref<16xf32, #tpu.memory_space<smem>>
    %c7_7 = arith.constant 7 : index
    %23 = memref.load %arg3[%c7_7] : memref<16xf32, #tpu.memory_space<smem>>
    %c8_8 = arith.constant 8 : index
    %24 = memref.load %arg3[%c8_8] : memref<16xf32, #tpu.memory_space<smem>>
    %c9_9 = arith.constant 9 : index
    %25 = memref.load %arg3[%c9_9] : memref<16xf32, #tpu.memory_space<smem>>
    %c10_10 = arith.constant 10 : index
    %26 = memref.load %arg3[%c10_10] : memref<16xf32, #tpu.memory_space<smem>>
    %c11_11 = arith.constant 11 : index
    %27 = memref.load %arg3[%c11_11] : memref<16xf32, #tpu.memory_space<smem>>
    %c12_12 = arith.constant 12 : index
    %28 = memref.load %arg3[%c12_12] : memref<16xf32, #tpu.memory_space<smem>>
    %c13_13 = arith.constant 13 : index
    %29 = memref.load %arg3[%c13_13] : memref<16xf32, #tpu.memory_space<smem>>
    %c14_14 = arith.constant 14 : index
    %30 = memref.load %arg3[%c14_14] : memref<16xf32, #tpu.memory_space<smem>>
    %c15_15 = arith.constant 15 : index
    %31 = memref.load %arg3[%c15_15] : memref<16xf32, #tpu.memory_space<smem>>
    %c0_16 = arith.constant 0 : index
    %32 = memref.load %arg4[%c0_16] : memref<4xf32, #tpu.memory_space<smem>>
    %c1_17 = arith.constant 1 : index
    %33 = memref.load %arg4[%c1_17] : memref<4xf32, #tpu.memory_space<smem>>
    %c2_18 = arith.constant 2 : index
    %34 = memref.load %arg4[%c2_18] : memref<4xf32, #tpu.memory_space<smem>>
    %c3_19 = arith.constant 3 : index
    %35 = memref.load %arg4[%c3_19] : memref<4xf32, #tpu.memory_space<smem>>
    %c0_20 = arith.constant 0 : index
    %36 = memref.load %arg5[%c0_20] : memref<4xf32, #tpu.memory_space<smem>>
    %c1_21 = arith.constant 1 : index
    %37 = memref.load %arg5[%c1_21] : memref<4xf32, #tpu.memory_space<smem>>
    %c2_22 = arith.constant 2 : index
    %38 = memref.load %arg5[%c2_22] : memref<4xf32, #tpu.memory_space<smem>>
    %c3_23 = arith.constant 3 : index
    %39 = memref.load %arg5[%c3_23] : memref<4xf32, #tpu.memory_space<smem>>
    %c0_i32 = arith.constant 0 : i32
    %c1_i32 = arith.constant 1 : i32
    %40 = arith.muli %c0_i32, %c1_i32 : i32
    %c0_i32_24 = arith.constant 0 : i32
    %41 = arith.addi %c0_i32_24, %40 : i32
    %c8_i32 = arith.constant 8 : i32
    %42 = arith.muli %41, %c8_i32 : i32
    %43 = tpu.assume_multiple %42, 8 : i32
    %c0_25 = arith.constant 0 : index
    %44 = arith.index_cast %43 : i32 to index
    %c0_26 = arith.constant 0 : index
    %45 = vector.load %arg1[%c0_25, %44, %c0_26] : memref<32x8x128xf32, #tpu.memory_space<vmem>>, vector<1x8x128xf32>
    %46 = vector.shape_cast %45 : vector<1x8x128xf32> to vector<8x128xf32>
    %c16 = arith.constant 16 : index
    %47 = arith.index_cast %43 : i32 to index
    %c0_27 = arith.constant 0 : index
    %48 = vector.load %arg1[%c16, %47, %c0_27] : memref<32x8x128xf32, #tpu.memory_space<vmem>>, vector<1x8x128xf32>
    %49 = vector.shape_cast %48 : vector<1x8x128xf32> to vector<8x128xf32>
    %cst = arith.constant 0.000000e+00 : f32
    %50 = vector.broadcast %cst : f32 to vector<8x128xf32>
    %51 = arith.subf %50, %49 : vector<8x128xf32>
    %c1_28 = arith.constant 1 : index
    %52 = arith.index_cast %43 : i32 to index
    %c0_29 = arith.constant 0 : index
    %53 = vector.load %arg1[%c1_28, %52, %c0_29] : memref<32x8x128xf32, #tpu.memory_space<vmem>>, vector<1x8x128xf32>
    %54 = vector.shape_cast %53 : vector<1x8x128xf32> to vector<8x128xf32>
    %c17 = arith.constant 17 : index
    %55 = arith.index_cast %43 : i32 to index
    %c0_30 = arith.constant 0 : index
    %56 = vector.load %arg1[%c17, %55, %c0_30] : memref<32x8x128xf32, #tpu.memory_space<vmem>>, vector<1x8x128xf32>
    %57 = vector.shape_cast %56 : vector<1x8x128xf32> to vector<8x128xf32>
    %58 = arith.mulf %54, %46 : vector<8x128xf32>
    %59 = arith.mulf %57, %46 : vector<8x128xf32>
    %60 = arith.subf %58, %59 : vector<8x128xf32>
    %61 = arith.mulf %57, %46 : vector<8x128xf32>
    %62 = arith.mulf %54, %46 : vector<8x128xf32>
    %63 = arith.addf %61, %62 : vector<8x128xf32>
    %64 = arith.mulf %54, %51 : vector<8x128xf32>
    %65 = arith.mulf %57, %49 : vector<8x128xf32>
    %66 = arith.subf %64, %65 : vector<8x128xf32>
    %67 = arith.mulf %57, %51 : vector<8x128xf32>
    %68 = arith.mulf %54, %49 : vector<8x128xf32>
    %69 = arith.addf %67, %68 : vector<8x128xf32>
    %c2_31 = arith.constant 2 : index
    %70 = arith.index_cast %43 : i32 to index
    %c0_32 = arith.constant 0 : index
    %71 = vector.load %arg1[%c2_31, %70, %c0_32] : memref<32x8x128xf32, #tpu.memory_space<vmem>>, vector<1x8x128xf32>
    %72 = vector.shape_cast %71 : vector<1x8x128xf32> to vector<8x128xf32>
    %c18 = arith.constant 18 : index
    %73 = arith.index_cast %43 : i32 to index
    %c0_33 = arith.constant 0 : index
    %74 = vector.load %arg1[%c18, %73, %c0_33] : memref<32x8x128xf32, #tpu.memory_space<vmem>>, vector<1x8x128xf32>
    %75 = vector.shape_cast %74 : vector<1x8x128xf32> to vector<8x128xf32>
    %76 = arith.mulf %72, %60 : vector<8x128xf32>
    %77 = arith.mulf %75, %66 : vector<8x128xf32>
    %78 = arith.addf %76, %77 : vector<8x128xf32>
    %79 = arith.mulf %72, %66 : vector<8x128xf32>
    %80 = arith.mulf %75, %60 : vector<8x128xf32>
    %81 = arith.subf %79, %80 : vector<8x128xf32>
    %82 = arith.mulf %72, %63 : vector<8x128xf32>
    %83 = arith.mulf %75, %69 : vector<8x128xf32>
    %84 = arith.subf %82, %83 : vector<8x128xf32>
    %85 = arith.mulf %72, %69 : vector<8x128xf32>
    %86 = arith.mulf %75, %63 : vector<8x128xf32>
    %87 = arith.addf %85, %86 : vector<8x128xf32>
    %c3_34 = arith.constant 3 : index
    %88 = arith.index_cast %43 : i32 to index
    %c0_35 = arith.constant 0 : index
    %89 = vector.load %arg1[%c3_34, %88, %c0_35] : memref<32x8x128xf32, #tpu.memory_space<vmem>>, vector<1x8x128xf32>
    %90 = vector.shape_cast %89 : vector<1x8x128xf32> to vector<8x128xf32>
    %c19 = arith.constant 19 : index
    %91 = arith.index_cast %43 : i32 to index
    %c0_36 = arith.constant 0 : index
    %92 = vector.load %arg1[%c19, %91, %c0_36] : memref<32x8x128xf32, #tpu.memory_space<vmem>>, vector<1x8x128xf32>
    %93 = vector.shape_cast %92 : vector<1x8x128xf32> to vector<8x128xf32>
    %94 = arith.mulf %90, %78 : vector<8x128xf32>
    %95 = arith.mulf %93, %84 : vector<8x128xf32>
    %96 = arith.subf %94, %95 : vector<8x128xf32>
    %97 = arith.mulf %93, %78 : vector<8x128xf32>
    %98 = arith.mulf %90, %84 : vector<8x128xf32>
    %99 = arith.addf %97, %98 : vector<8x128xf32>
    %100 = arith.mulf %90, %81 : vector<8x128xf32>
    %101 = arith.mulf %93, %87 : vector<8x128xf32>
    %102 = arith.subf %100, %101 : vector<8x128xf32>
    %103 = arith.mulf %93, %81 : vector<8x128xf32>
    %104 = arith.mulf %90, %87 : vector<8x128xf32>
    %105 = arith.addf %103, %104 : vector<8x128xf32>
    %c4_37 = arith.constant 4 : index
    %106 = arith.index_cast %43 : i32 to index
    %c0_38 = arith.constant 0 : index
    %107 = vector.load %arg1[%c4_37, %106, %c0_38] : memref<32x8x128xf32, #tpu.memory_space<vmem>>, vector<1x8x128xf32>
    %108 = vector.shape_cast %107 : vector<1x8x128xf32> to vector<8x128xf32>
    %c20 = arith.constant 20 : index
    %109 = arith.index_cast %43 : i32 to index
    %c0_39 = arith.constant 0 : index
    %110 = vector.load %arg1[%c20, %109, %c0_39] : memref<32x8x128xf32, #tpu.memory_space<vmem>>, vector<1x8x128xf32>
    %111 = vector.shape_cast %110 : vector<1x8x128xf32> to vector<8x128xf32>
    %112 = arith.mulf %108, %96 : vector<8x128xf32>
    %113 = arith.mulf %111, %102 : vector<8x128xf32>
    %114 = arith.addf %112, %113 : vector<8x128xf32>
    %115 = arith.mulf %108, %102 : vector<8x128xf32>
    %116 = arith.mulf %111, %96 : vector<8x128xf32>
    %117 = arith.subf %115, %116 : vector<8x128xf32>
    %118 = arith.mulf %108, %99 : vector<8x128xf32>
    %119 = arith.mulf %111, %105 : vector<8x128xf32>
    %120 = arith.subf %118, %119 : vector<8x128xf32>
    %121 = arith.mulf %108, %105 : vector<8x128xf32>
    %122 = arith.mulf %111, %99 : vector<8x128xf32>
    %123 = arith.addf %121, %122 : vector<8x128xf32>
    %c5_40 = arith.constant 5 : index
    %124 = arith.index_cast %43 : i32 to index
    %c0_41 = arith.constant 0 : index
    %125 = vector.load %arg1[%c5_40, %124, %c0_41] : memref<32x8x128xf32, #tpu.memory_space<vmem>>, vector<1x8x128xf32>
    %126 = vector.shape_cast %125 : vector<1x8x128xf32> to vector<8x128xf32>
    %c21 = arith.constant 21 : index
    %127 = arith.index_cast %43 : i32 to index
    %c0_42 = arith.constant 0 : index
    %128 = vector.load %arg1[%c21, %127, %c0_42] : memref<32x8x128xf32, #tpu.memory_space<vmem>>, vector<1x8x128xf32>
    %129 = vector.shape_cast %128 : vector<1x8x128xf32> to vector<8x128xf32>
    %cst_43 = arith.constant 0.000000e+00 : f32
    %130 = vector.broadcast %cst_43 : f32 to vector<8x128xf32>
    %131 = arith.subf %130, %129 : vector<8x128xf32>
    %c6_44 = arith.constant 6 : index
    %132 = arith.index_cast %43 : i32 to index
    %c0_45 = arith.constant 0 : index
    %133 = vector.load %arg1[%c6_44, %132, %c0_45] : memref<32x8x128xf32, #tpu.memory_space<vmem>>, vector<1x8x128xf32>
    %134 = vector.shape_cast %133 : vector<1x8x128xf32> to vector<8x128xf32>
    %c22 = arith.constant 22 : index
    %135 = arith.index_cast %43 : i32 to index
    %c0_46 = arith.constant 0 : index
    %136 = vector.load %arg1[%c22, %135, %c0_46] : memref<32x8x128xf32, #tpu.memory_space<vmem>>, vector<1x8x128xf32>
    %137 = vector.shape_cast %136 : vector<1x8x128xf32> to vector<8x128xf32>
    %138 = arith.mulf %134, %126 : vector<8x128xf32>
    %139 = arith.mulf %137, %126 : vector<8x128xf32>
    %140 = arith.subf %138, %139 : vector<8x128xf32>
    %141 = arith.mulf %137, %126 : vector<8x128xf32>
    %142 = arith.mulf %134, %126 : vector<8x128xf32>
    %143 = arith.addf %141, %142 : vector<8x128xf32>
    %144 = arith.mulf %134, %131 : vector<8x128xf32>
    %145 = arith.mulf %137, %129 : vector<8x128xf32>
    %146 = arith.subf %144, %145 : vector<8x128xf32>
    %147 = arith.mulf %137, %131 : vector<8x128xf32>
    %148 = arith.mulf %134, %129 : vector<8x128xf32>
    %149 = arith.addf %147, %148 : vector<8x128xf32>
    %c7_47 = arith.constant 7 : index
    %150 = arith.index_cast %43 : i32 to index
    %c0_48 = arith.constant 0 : index
    %151 = vector.load %arg1[%c7_47, %150, %c0_48] : memref<32x8x128xf32, #tpu.memory_space<vmem>>, vector<1x8x128xf32>
    %152 = vector.shape_cast %151 : vector<1x8x128xf32> to vector<8x128xf32>
    %c23 = arith.constant 23 : index
    %153 = arith.index_cast %43 : i32 to index
    %c0_49 = arith.constant 0 : index
    %154 = vector.load %arg1[%c23, %153, %c0_49] : memref<32x8x128xf32, #tpu.memory_space<vmem>>, vector<1x8x128xf32>
    %155 = vector.shape_cast %154 : vector<1x8x128xf32> to vector<8x128xf32>
    %156 = arith.mulf %152, %140 : vector<8x128xf32>
    %157 = arith.mulf %155, %146 : vector<8x128xf32>
    %158 = arith.addf %156, %157 : vector<8x128xf32>
    %159 = arith.mulf %152, %146 : vector<8x128xf32>
    %160 = arith.mulf %155, %140 : vector<8x128xf32>
    %161 = arith.subf %159, %160 : vector<8x128xf32>
    %162 = arith.mulf %152, %143 : vector<8x128xf32>
    %163 = arith.mulf %155, %149 : vector<8x128xf32>
    %164 = arith.subf %162, %163 : vector<8x128xf32>
    %165 = arith.mulf %152, %149 : vector<8x128xf32>
    %166 = arith.mulf %155, %143 : vector<8x128xf32>
    %167 = arith.addf %165, %166 : vector<8x128xf32>
    %c8_50 = arith.constant 8 : index
    %168 = arith.index_cast %43 : i32 to index
    %c0_51 = arith.constant 0 : index
    %169 = vector.load %arg1[%c8_50, %168, %c0_51] : memref<32x8x128xf32, #tpu.memory_space<vmem>>, vector<1x8x128xf32>
    %170 = vector.shape_cast %169 : vector<1x8x128xf32> to vector<8x128xf32>
    %c24 = arith.constant 24 : index
    %171 = arith.index_cast %43 : i32 to index
    %c0_52 = arith.constant 0 : index
    %172 = vector.load %arg1[%c24, %171, %c0_52] : memref<32x8x128xf32, #tpu.memory_space<vmem>>, vector<1x8x128xf32>
    %173 = vector.shape_cast %172 : vector<1x8x128xf32> to vector<8x128xf32>
    %174 = arith.mulf %170, %158 : vector<8x128xf32>
    %175 = arith.mulf %173, %164 : vector<8x128xf32>
    %176 = arith.subf %174, %175 : vector<8x128xf32>
    %177 = arith.mulf %173, %158 : vector<8x128xf32>
    %178 = arith.mulf %170, %164 : vector<8x128xf32>
    %179 = arith.addf %177, %178 : vector<8x128xf32>
    %180 = arith.mulf %170, %161 : vector<8x128xf32>
    %181 = arith.mulf %173, %167 : vector<8x128xf32>
    %182 = arith.subf %180, %181 : vector<8x128xf32>
    %183 = arith.mulf %173, %161 : vector<8x128xf32>
    %184 = arith.mulf %170, %167 : vector<8x128xf32>
    %185 = arith.addf %183, %184 : vector<8x128xf32>
    %c9_53 = arith.constant 9 : index
    %186 = arith.index_cast %43 : i32 to index
    %c0_54 = arith.constant 0 : index
    %187 = vector.load %arg1[%c9_53, %186, %c0_54] : memref<32x8x128xf32, #tpu.memory_space<vmem>>, vector<1x8x128xf32>
    %188 = vector.shape_cast %187 : vector<1x8x128xf32> to vector<8x128xf32>
    %c25 = arith.constant 25 : index
    %189 = arith.index_cast %43 : i32 to index
    %c0_55 = arith.constant 0 : index
    %190 = vector.load %arg1[%c25, %189, %c0_55] : memref<32x8x128xf32, #tpu.memory_space<vmem>>, vector<1x8x128xf32>
    %191 = vector.shape_cast %190 : vector<1x8x128xf32> to vector<8x128xf32>
    %192 = arith.mulf %188, %176 : vector<8x128xf32>
    %193 = arith.mulf %191, %182 : vector<8x128xf32>
    %194 = arith.addf %192, %193 : vector<8x128xf32>
    %195 = arith.mulf %188, %182 : vector<8x128xf32>
    %196 = arith.mulf %191, %176 : vector<8x128xf32>
    %197 = arith.subf %195, %196 : vector<8x128xf32>
    %198 = arith.mulf %188, %179 : vector<8x128xf32>
    %199 = arith.mulf %191, %185 : vector<8x128xf32>
    %200 = arith.subf %198, %199 : vector<8x128xf32>
    %201 = arith.mulf %188, %185 : vector<8x128xf32>
    %202 = arith.mulf %191, %179 : vector<8x128xf32>
    %203 = arith.addf %201, %202 : vector<8x128xf32>
    %c10_56 = arith.constant 10 : index
    %204 = arith.index_cast %43 : i32 to index
    %c0_57 = arith.constant 0 : index
    %205 = vector.load %arg1[%c10_56, %204, %c0_57] : memref<32x8x128xf32, #tpu.memory_space<vmem>>, vector<1x8x128xf32>
    %206 = vector.shape_cast %205 : vector<1x8x128xf32> to vector<8x128xf32>
    %c26 = arith.constant 26 : index
    %207 = arith.index_cast %43 : i32 to index
    %c0_58 = arith.constant 0 : index
    %208 = vector.load %arg1[%c26, %207, %c0_58] : memref<32x8x128xf32, #tpu.memory_space<vmem>>, vector<1x8x128xf32>
    %209 = vector.shape_cast %208 : vector<1x8x128xf32> to vector<8x128xf32>
    %cst_59 = arith.constant 0.000000e+00 : f32
    %210 = vector.broadcast %cst_59 : f32 to vector<8x128xf32>
    %211 = arith.subf %210, %209 : vector<8x128xf32>
    %c11_60 = arith.constant 11 : index
    %212 = arith.index_cast %43 : i32 to index
    %c0_61 = arith.constant 0 : index
    %213 = vector.load %arg1[%c11_60, %212, %c0_61] : memref<32x8x128xf32, #tpu.memory_space<vmem>>, vector<1x8x128xf32>
    %214 = vector.shape_cast %213 : vector<1x8x128xf32> to vector<8x128xf32>
    %c27 = arith.constant 27 : index
    %215 = arith.index_cast %43 : i32 to index
    %c0_62 = arith.constant 0 : index
    %216 = vector.load %arg1[%c27, %215, %c0_62] : memref<32x8x128xf32, #tpu.memory_space<vmem>>, vector<1x8x128xf32>
    %217 = vector.shape_cast %216 : vector<1x8x128xf32> to vector<8x128xf32>
    %218 = arith.mulf %214, %206 : vector<8x128xf32>
    %219 = arith.mulf %217, %206 : vector<8x128xf32>
    %220 = arith.subf %218, %219 : vector<8x128xf32>
    %221 = arith.mulf %217, %206 : vector<8x128xf32>
    %222 = arith.mulf %214, %206 : vector<8x128xf32>
    %223 = arith.addf %221, %222 : vector<8x128xf32>
    %224 = arith.mulf %214, %211 : vector<8x128xf32>
    %225 = arith.mulf %217, %209 : vector<8x128xf32>
    %226 = arith.subf %224, %225 : vector<8x128xf32>
    %227 = arith.mulf %217, %211 : vector<8x128xf32>
    %228 = arith.mulf %214, %209 : vector<8x128xf32>
    %229 = arith.addf %227, %228 : vector<8x128xf32>
    %c12_63 = arith.constant 12 : index
    %230 = arith.index_cast %43 : i32 to index
    %c0_64 = arith.constant 0 : index
    %231 = vector.load %arg1[%c12_63, %230, %c0_64] : memref<32x8x128xf32, #tpu.memory_space<vmem>>, vector<1x8x128xf32>
    %232 = vector.shape_cast %231 : vector<1x8x128xf32> to vector<8x128xf32>
    %c28 = arith.constant 28 : index
    %233 = arith.index_cast %43 : i32 to index
    %c0_65 = arith.constant 0 : index
    %234 = vector.load %arg1[%c28, %233, %c0_65] : memref<32x8x128xf32, #tpu.memory_space<vmem>>, vector<1x8x128xf32>
    %235 = vector.shape_cast %234 : vector<1x8x128xf32> to vector<8x128xf32>
    %236 = arith.mulf %232, %220 : vector<8x128xf32>
    %237 = arith.mulf %235, %226 : vector<8x128xf32>
    %238 = arith.addf %236, %237 : vector<8x128xf32>
    %239 = arith.mulf %232, %226 : vector<8x128xf32>
    %240 = arith.mulf %235, %220 : vector<8x128xf32>
    %241 = arith.subf %239, %240 : vector<8x128xf32>
    %242 = arith.mulf %232, %223 : vector<8x128xf32>
    %243 = arith.mulf %235, %229 : vector<8x128xf32>
    %244 = arith.subf %242, %243 : vector<8x128xf32>
    %245 = arith.mulf %232, %229 : vector<8x128xf32>
    %246 = arith.mulf %235, %223 : vector<8x128xf32>
    %247 = arith.addf %245, %246 : vector<8x128xf32>
    %c13_66 = arith.constant 13 : index
    %248 = arith.index_cast %43 : i32 to index
    %c0_67 = arith.constant 0 : index
    %249 = vector.load %arg1[%c13_66, %248, %c0_67] : memref<32x8x128xf32, #tpu.memory_space<vmem>>, vector<1x8x128xf32>
    %250 = vector.shape_cast %249 : vector<1x8x128xf32> to vector<8x128xf32>
    %c29 = arith.constant 29 : index
    %251 = arith.index_cast %43 : i32 to index
    %c0_68 = arith.constant 0 : index
    %252 = vector.load %arg1[%c29, %251, %c0_68] : memref<32x8x128xf32, #tpu.memory_space<vmem>>, vector<1x8x128xf32>
    %253 = vector.shape_cast %252 : vector<1x8x128xf32> to vector<8x128xf32>
    %254 = arith.mulf %250, %238 : vector<8x128xf32>
    %255 = arith.mulf %253, %244 : vector<8x128xf32>
    %256 = arith.subf %254, %255 : vector<8x128xf32>
    %257 = arith.mulf %253, %238 : vector<8x128xf32>
    %258 = arith.mulf %250, %244 : vector<8x128xf32>
    %259 = arith.addf %257, %258 : vector<8x128xf32>
    %260 = arith.mulf %250, %241 : vector<8x128xf32>
    %261 = arith.mulf %253, %247 : vector<8x128xf32>
    %262 = arith.subf %260, %261 : vector<8x128xf32>
    %263 = arith.mulf %253, %241 : vector<8x128xf32>
    %264 = arith.mulf %250, %247 : vector<8x128xf32>
    %265 = arith.addf %263, %264 : vector<8x128xf32>
    %c14_69 = arith.constant 14 : index
    %266 = arith.index_cast %43 : i32 to index
    %c0_70 = arith.constant 0 : index
    %267 = vector.load %arg1[%c14_69, %266, %c0_70] : memref<32x8x128xf32, #tpu.memory_space<vmem>>, vector<1x8x128xf32>
    %268 = vector.shape_cast %267 : vector<1x8x128xf32> to vector<8x128xf32>
    %c30 = arith.constant 30 : index
    %269 = arith.index_cast %43 : i32 to index
    %c0_71 = arith.constant 0 : index
    %270 = vector.load %arg1[%c30, %269, %c0_71] : memref<32x8x128xf32, #tpu.memory_space<vmem>>, vector<1x8x128xf32>
    %271 = vector.shape_cast %270 : vector<1x8x128xf32> to vector<8x128xf32>
    %272 = arith.mulf %268, %256 : vector<8x128xf32>
    %273 = arith.mulf %271, %262 : vector<8x128xf32>
    %274 = arith.addf %272, %273 : vector<8x128xf32>
    %275 = arith.mulf %268, %262 : vector<8x128xf32>
    %276 = arith.mulf %271, %256 : vector<8x128xf32>
    %277 = arith.subf %275, %276 : vector<8x128xf32>
    %278 = arith.mulf %268, %259 : vector<8x128xf32>
    %279 = arith.mulf %271, %265 : vector<8x128xf32>
    %280 = arith.subf %278, %279 : vector<8x128xf32>
    %281 = arith.mulf %268, %265 : vector<8x128xf32>
    %282 = arith.mulf %271, %259 : vector<8x128xf32>
    %283 = arith.addf %281, %282 : vector<8x128xf32>
    %c15_72 = arith.constant 15 : index
    %284 = arith.index_cast %43 : i32 to index
    %c0_73 = arith.constant 0 : index
    %285 = vector.load %arg1[%c15_72, %284, %c0_73] : memref<32x8x128xf32, #tpu.memory_space<vmem>>, vector<1x8x128xf32>
    %286 = vector.shape_cast %285 : vector<1x8x128xf32> to vector<8x128xf32>
    %c31 = arith.constant 31 : index
    %287 = arith.index_cast %43 : i32 to index
    %c0_74 = arith.constant 0 : index
    %288 = vector.load %arg1[%c31, %287, %c0_74] : memref<32x8x128xf32, #tpu.memory_space<vmem>>, vector<1x8x128xf32>
    %289 = vector.shape_cast %288 : vector<1x8x128xf32> to vector<8x128xf32>
    %cst_75 = arith.constant 0.000000e+00 : f32
    %290 = vector.broadcast %cst_75 : f32 to vector<8x128xf32>
    %291 = arith.subf %290, %289 : vector<8x128xf32>
    %292 = arith.mulf %114, %194 : vector<8x128xf32>
    %293 = arith.mulf %117, %197 : vector<8x128xf32>
    %294 = arith.subf %292, %293 : vector<8x128xf32>
    %295 = arith.mulf %114, %197 : vector<8x128xf32>
    %296 = arith.mulf %117, %194 : vector<8x128xf32>
    %297 = arith.addf %295, %296 : vector<8x128xf32>
    %298 = arith.mulf %114, %200 : vector<8x128xf32>
    %299 = arith.mulf %117, %203 : vector<8x128xf32>
    %300 = arith.subf %298, %299 : vector<8x128xf32>
    %301 = arith.mulf %114, %203 : vector<8x128xf32>
    %302 = arith.mulf %117, %200 : vector<8x128xf32>
    %303 = arith.addf %301, %302 : vector<8x128xf32>
    %304 = arith.mulf %120, %194 : vector<8x128xf32>
    %305 = arith.mulf %123, %197 : vector<8x128xf32>
    %306 = arith.subf %304, %305 : vector<8x128xf32>
    %307 = arith.mulf %120, %197 : vector<8x128xf32>
    %308 = arith.mulf %123, %194 : vector<8x128xf32>
    %309 = arith.addf %307, %308 : vector<8x128xf32>
    %310 = arith.mulf %120, %200 : vector<8x128xf32>
    %311 = arith.mulf %123, %203 : vector<8x128xf32>
    %312 = arith.subf %310, %311 : vector<8x128xf32>
    %313 = arith.mulf %120, %203 : vector<8x128xf32>
    %314 = arith.mulf %123, %200 : vector<8x128xf32>
    %315 = arith.addf %313, %314 : vector<8x128xf32>
    %316 = arith.mulf %274, %286 : vector<8x128xf32>
    %317 = arith.mulf %277, %291 : vector<8x128xf32>
    %318 = arith.subf %316, %317 : vector<8x128xf32>
    %319 = arith.mulf %274, %291 : vector<8x128xf32>
    %320 = arith.mulf %277, %286 : vector<8x128xf32>
    %321 = arith.addf %319, %320 : vector<8x128xf32>
    %322 = arith.mulf %274, %286 : vector<8x128xf32>
    %323 = arith.mulf %277, %289 : vector<8x128xf32>
    %324 = arith.subf %322, %323 : vector<8x128xf32>
    %325 = arith.mulf %274, %289 : vector<8x128xf32>
    %326 = arith.mulf %277, %286 : vector<8x128xf32>
    %327 = arith.addf %325, %326 : vector<8x128xf32>
    %328 = arith.mulf %280, %286 : vector<8x128xf32>
    %329 = arith.mulf %283, %291 : vector<8x128xf32>
    %330 = arith.subf %328, %329 : vector<8x128xf32>
    %331 = arith.mulf %280, %291 : vector<8x128xf32>
    %332 = arith.mulf %283, %286 : vector<8x128xf32>
    %333 = arith.addf %331, %332 : vector<8x128xf32>
    %334 = arith.mulf %280, %286 : vector<8x128xf32>
    %335 = arith.mulf %283, %289 : vector<8x128xf32>
    %336 = arith.subf %334, %335 : vector<8x128xf32>
    %337 = arith.mulf %280, %289 : vector<8x128xf32>
    %338 = arith.mulf %283, %286 : vector<8x128xf32>
    %339 = arith.addf %337, %338 : vector<8x128xf32>
    %340 = arith.mulf %294, %318 : vector<8x128xf32>
    %341 = arith.mulf %297, %321 : vector<8x128xf32>
    %342 = arith.subf %340, %341 : vector<8x128xf32>
    %343 = arith.mulf %294, %321 : vector<8x128xf32>
    %344 = arith.mulf %297, %318 : vector<8x128xf32>
    %345 = arith.addf %343, %344 : vector<8x128xf32>
    %346 = vector.broadcast %0 : f32 to vector<8x128xf32>
    %347 = arith.mulf %346, %342 : vector<8x128xf32>
    %348 = vector.broadcast %16 : f32 to vector<8x128xf32>
    %349 = arith.mulf %348, %345 : vector<8x128xf32>
    %350 = arith.subf %347, %349 : vector<8x128xf32>
    %351 = vector.broadcast %16 : f32 to vector<8x128xf32>
    %352 = arith.mulf %351, %342 : vector<8x128xf32>
    %353 = vector.broadcast %0 : f32 to vector<8x128xf32>
    %354 = arith.mulf %353, %345 : vector<8x128xf32>
    %355 = arith.addf %352, %354 : vector<8x128xf32>
    %356 = arith.mulf %294, %324 : vector<8x128xf32>
    %357 = arith.mulf %297, %327 : vector<8x128xf32>
    %358 = arith.subf %356, %357 : vector<8x128xf32>
    %359 = arith.mulf %294, %327 : vector<8x128xf32>
    %360 = arith.mulf %297, %324 : vector<8x128xf32>
    %361 = arith.addf %359, %360 : vector<8x128xf32>
    %362 = vector.broadcast %1 : f32 to vector<8x128xf32>
    %363 = arith.mulf %362, %358 : vector<8x128xf32>
    %364 = vector.broadcast %17 : f32 to vector<8x128xf32>
    %365 = arith.mulf %364, %361 : vector<8x128xf32>
    %366 = arith.subf %363, %365 : vector<8x128xf32>
    %367 = vector.broadcast %17 : f32 to vector<8x128xf32>
    %368 = arith.mulf %367, %358 : vector<8x128xf32>
    %369 = vector.broadcast %1 : f32 to vector<8x128xf32>
    %370 = arith.mulf %369, %361 : vector<8x128xf32>
    %371 = arith.addf %368, %370 : vector<8x128xf32>
    %372 = arith.mulf %294, %330 : vector<8x128xf32>
    %373 = arith.mulf %297, %333 : vector<8x128xf32>
    %374 = arith.subf %372, %373 : vector<8x128xf32>
    %375 = arith.mulf %294, %333 : vector<8x128xf32>
    %376 = arith.mulf %297, %330 : vector<8x128xf32>
    %377 = arith.addf %375, %376 : vector<8x128xf32>
    %378 = vector.broadcast %2 : f32 to vector<8x128xf32>
    %379 = arith.mulf %378, %374 : vector<8x128xf32>
    %380 = vector.broadcast %18 : f32 to vector<8x128xf32>
    %381 = arith.mulf %380, %377 : vector<8x128xf32>
    %382 = arith.subf %379, %381 : vector<8x128xf32>
    %383 = vector.broadcast %18 : f32 to vector<8x128xf32>
    %384 = arith.mulf %383, %374 : vector<8x128xf32>
    %385 = vector.broadcast %2 : f32 to vector<8x128xf32>
    %386 = arith.mulf %385, %377 : vector<8x128xf32>
    %387 = arith.addf %384, %386 : vector<8x128xf32>
    %388 = arith.mulf %294, %336 : vector<8x128xf32>
    %389 = arith.mulf %297, %339 : vector<8x128xf32>
    %390 = arith.subf %388, %389 : vector<8x128xf32>
    %391 = arith.mulf %294, %339 : vector<8x128xf32>
    %392 = arith.mulf %297, %336 : vector<8x128xf32>
    %393 = arith.addf %391, %392 : vector<8x128xf32>
    %394 = vector.broadcast %3 : f32 to vector<8x128xf32>
    %395 = arith.mulf %394, %390 : vector<8x128xf32>
    %396 = vector.broadcast %19 : f32 to vector<8x128xf32>
    %397 = arith.mulf %396, %393 : vector<8x128xf32>
    %398 = arith.subf %395, %397 : vector<8x128xf32>
    %399 = vector.broadcast %19 : f32 to vector<8x128xf32>
    %400 = arith.mulf %399, %390 : vector<8x128xf32>
    %401 = vector.broadcast %3 : f32 to vector<8x128xf32>
    %402 = arith.mulf %401, %393 : vector<8x128xf32>
    %403 = arith.addf %400, %402 : vector<8x128xf32>
    %404 = arith.mulf %300, %318 : vector<8x128xf32>
    %405 = arith.mulf %303, %321 : vector<8x128xf32>
    %406 = arith.subf %404, %405 : vector<8x128xf32>
    %407 = arith.mulf %300, %321 : vector<8x128xf32>
    %408 = arith.mulf %303, %318 : vector<8x128xf32>
    %409 = arith.addf %407, %408 : vector<8x128xf32>
    %410 = vector.broadcast %4 : f32 to vector<8x128xf32>
    %411 = arith.mulf %410, %406 : vector<8x128xf32>
    %412 = vector.broadcast %20 : f32 to vector<8x128xf32>
    %413 = arith.mulf %412, %409 : vector<8x128xf32>
    %414 = arith.subf %411, %413 : vector<8x128xf32>
    %415 = vector.broadcast %20 : f32 to vector<8x128xf32>
    %416 = arith.mulf %415, %406 : vector<8x128xf32>
    %417 = vector.broadcast %4 : f32 to vector<8x128xf32>
    %418 = arith.mulf %417, %409 : vector<8x128xf32>
    %419 = arith.addf %416, %418 : vector<8x128xf32>
    %420 = arith.mulf %300, %324 : vector<8x128xf32>
    %421 = arith.mulf %303, %327 : vector<8x128xf32>
    %422 = arith.subf %420, %421 : vector<8x128xf32>
    %423 = arith.mulf %300, %327 : vector<8x128xf32>
    %424 = arith.mulf %303, %324 : vector<8x128xf32>
    %425 = arith.addf %423, %424 : vector<8x128xf32>
    %426 = vector.broadcast %5 : f32 to vector<8x128xf32>
    %427 = arith.mulf %426, %422 : vector<8x128xf32>
    %428 = vector.broadcast %21 : f32 to vector<8x128xf32>
    %429 = arith.mulf %428, %425 : vector<8x128xf32>
    %430 = arith.subf %427, %429 : vector<8x128xf32>
    %431 = vector.broadcast %21 : f32 to vector<8x128xf32>
    %432 = arith.mulf %431, %422 : vector<8x128xf32>
    %433 = vector.broadcast %5 : f32 to vector<8x128xf32>
    %434 = arith.mulf %433, %425 : vector<8x128xf32>
    %435 = arith.addf %432, %434 : vector<8x128xf32>
    %436 = arith.mulf %300, %330 : vector<8x128xf32>
    %437 = arith.mulf %303, %333 : vector<8x128xf32>
    %438 = arith.subf %436, %437 : vector<8x128xf32>
    %439 = arith.mulf %300, %333 : vector<8x128xf32>
    %440 = arith.mulf %303, %330 : vector<8x128xf32>
    %441 = arith.addf %439, %440 : vector<8x128xf32>
    %442 = vector.broadcast %6 : f32 to vector<8x128xf32>
    %443 = arith.mulf %442, %438 : vector<8x128xf32>
    %444 = vector.broadcast %22 : f32 to vector<8x128xf32>
    %445 = arith.mulf %444, %441 : vector<8x128xf32>
    %446 = arith.subf %443, %445 : vector<8x128xf32>
    %447 = vector.broadcast %22 : f32 to vector<8x128xf32>
    %448 = arith.mulf %447, %438 : vector<8x128xf32>
    %449 = vector.broadcast %6 : f32 to vector<8x128xf32>
    %450 = arith.mulf %449, %441 : vector<8x128xf32>
    %451 = arith.addf %448, %450 : vector<8x128xf32>
    %452 = arith.mulf %300, %336 : vector<8x128xf32>
    %453 = arith.mulf %303, %339 : vector<8x128xf32>
    %454 = arith.subf %452, %453 : vector<8x128xf32>
    %455 = arith.mulf %300, %339 : vector<8x128xf32>
    %456 = arith.mulf %303, %336 : vector<8x128xf32>
    %457 = arith.addf %455, %456 : vector<8x128xf32>
    %458 = vector.broadcast %7 : f32 to vector<8x128xf32>
    %459 = arith.mulf %458, %454 : vector<8x128xf32>
    %460 = vector.broadcast %23 : f32 to vector<8x128xf32>
    %461 = arith.mulf %460, %457 : vector<8x128xf32>
    %462 = arith.subf %459, %461 : vector<8x128xf32>
    %463 = vector.broadcast %23 : f32 to vector<8x128xf32>
    %464 = arith.mulf %463, %454 : vector<8x128xf32>
    %465 = vector.broadcast %7 : f32 to vector<8x128xf32>
    %466 = arith.mulf %465, %457 : vector<8x128xf32>
    %467 = arith.addf %464, %466 : vector<8x128xf32>
    %468 = arith.mulf %306, %318 : vector<8x128xf32>
    %469 = arith.mulf %309, %321 : vector<8x128xf32>
    %470 = arith.subf %468, %469 : vector<8x128xf32>
    %471 = arith.mulf %306, %321 : vector<8x128xf32>
    %472 = arith.mulf %309, %318 : vector<8x128xf32>
    %473 = arith.addf %471, %472 : vector<8x128xf32>
    %474 = vector.broadcast %8 : f32 to vector<8x128xf32>
    %475 = arith.mulf %474, %470 : vector<8x128xf32>
    %476 = vector.broadcast %24 : f32 to vector<8x128xf32>
    %477 = arith.mulf %476, %473 : vector<8x128xf32>
    %478 = arith.subf %475, %477 : vector<8x128xf32>
    %479 = vector.broadcast %24 : f32 to vector<8x128xf32>
    %480 = arith.mulf %479, %470 : vector<8x128xf32>
    %481 = vector.broadcast %8 : f32 to vector<8x128xf32>
    %482 = arith.mulf %481, %473 : vector<8x128xf32>
    %483 = arith.addf %480, %482 : vector<8x128xf32>
    %484 = arith.mulf %306, %324 : vector<8x128xf32>
    %485 = arith.mulf %309, %327 : vector<8x128xf32>
    %486 = arith.subf %484, %485 : vector<8x128xf32>
    %487 = arith.mulf %306, %327 : vector<8x128xf32>
    %488 = arith.mulf %309, %324 : vector<8x128xf32>
    %489 = arith.addf %487, %488 : vector<8x128xf32>
    %490 = vector.broadcast %9 : f32 to vector<8x128xf32>
    %491 = arith.mulf %490, %486 : vector<8x128xf32>
    %492 = vector.broadcast %25 : f32 to vector<8x128xf32>
    %493 = arith.mulf %492, %489 : vector<8x128xf32>
    %494 = arith.subf %491, %493 : vector<8x128xf32>
    %495 = vector.broadcast %25 : f32 to vector<8x128xf32>
    %496 = arith.mulf %495, %486 : vector<8x128xf32>
    %497 = vector.broadcast %9 : f32 to vector<8x128xf32>
    %498 = arith.mulf %497, %489 : vector<8x128xf32>
    %499 = arith.addf %496, %498 : vector<8x128xf32>
    %500 = arith.mulf %306, %330 : vector<8x128xf32>
    %501 = arith.mulf %309, %333 : vector<8x128xf32>
    %502 = arith.subf %500, %501 : vector<8x128xf32>
    %503 = arith.mulf %306, %333 : vector<8x128xf32>
    %504 = arith.mulf %309, %330 : vector<8x128xf32>
    %505 = arith.addf %503, %504 : vector<8x128xf32>
    %506 = vector.broadcast %10 : f32 to vector<8x128xf32>
    %507 = arith.mulf %506, %502 : vector<8x128xf32>
    %508 = vector.broadcast %26 : f32 to vector<8x128xf32>
    %509 = arith.mulf %508, %505 : vector<8x128xf32>
    %510 = arith.subf %507, %509 : vector<8x128xf32>
    %511 = vector.broadcast %26 : f32 to vector<8x128xf32>
    %512 = arith.mulf %511, %502 : vector<8x128xf32>
    %513 = vector.broadcast %10 : f32 to vector<8x128xf32>
    %514 = arith.mulf %513, %505 : vector<8x128xf32>
    %515 = arith.addf %512, %514 : vector<8x128xf32>
    %516 = arith.mulf %306, %336 : vector<8x128xf32>
    %517 = arith.mulf %309, %339 : vector<8x128xf32>
    %518 = arith.subf %516, %517 : vector<8x128xf32>
    %519 = arith.mulf %306, %339 : vector<8x128xf32>
    %520 = arith.mulf %309, %336 : vector<8x128xf32>
    %521 = arith.addf %519, %520 : vector<8x128xf32>
    %522 = vector.broadcast %11 : f32 to vector<8x128xf32>
    %523 = arith.mulf %522, %518 : vector<8x128xf32>
    %524 = vector.broadcast %27 : f32 to vector<8x128xf32>
    %525 = arith.mulf %524, %521 : vector<8x128xf32>
    %526 = arith.subf %523, %525 : vector<8x128xf32>
    %527 = vector.broadcast %27 : f32 to vector<8x128xf32>
    %528 = arith.mulf %527, %518 : vector<8x128xf32>
    %529 = vector.broadcast %11 : f32 to vector<8x128xf32>
    %530 = arith.mulf %529, %521 : vector<8x128xf32>
    %531 = arith.addf %528, %530 : vector<8x128xf32>
    %532 = arith.mulf %312, %318 : vector<8x128xf32>
    %533 = arith.mulf %315, %321 : vector<8x128xf32>
    %534 = arith.subf %532, %533 : vector<8x128xf32>
    %535 = arith.mulf %312, %321 : vector<8x128xf32>
    %536 = arith.mulf %315, %318 : vector<8x128xf32>
    %537 = arith.addf %535, %536 : vector<8x128xf32>
    %538 = vector.broadcast %12 : f32 to vector<8x128xf32>
    %539 = arith.mulf %538, %534 : vector<8x128xf32>
    %540 = vector.broadcast %28 : f32 to vector<8x128xf32>
    %541 = arith.mulf %540, %537 : vector<8x128xf32>
    %542 = arith.subf %539, %541 : vector<8x128xf32>
    %543 = vector.broadcast %28 : f32 to vector<8x128xf32>
    %544 = arith.mulf %543, %534 : vector<8x128xf32>
    %545 = vector.broadcast %12 : f32 to vector<8x128xf32>
    %546 = arith.mulf %545, %537 : vector<8x128xf32>
    %547 = arith.addf %544, %546 : vector<8x128xf32>
    %548 = arith.mulf %312, %324 : vector<8x128xf32>
    %549 = arith.mulf %315, %327 : vector<8x128xf32>
    %550 = arith.subf %548, %549 : vector<8x128xf32>
    %551 = arith.mulf %312, %327 : vector<8x128xf32>
    %552 = arith.mulf %315, %324 : vector<8x128xf32>
    %553 = arith.addf %551, %552 : vector<8x128xf32>
    %554 = vector.broadcast %13 : f32 to vector<8x128xf32>
    %555 = arith.mulf %554, %550 : vector<8x128xf32>
    %556 = vector.broadcast %29 : f32 to vector<8x128xf32>
    %557 = arith.mulf %556, %553 : vector<8x128xf32>
    %558 = arith.subf %555, %557 : vector<8x128xf32>
    %559 = vector.broadcast %29 : f32 to vector<8x128xf32>
    %560 = arith.mulf %559, %550 : vector<8x128xf32>
    %561 = vector.broadcast %13 : f32 to vector<8x128xf32>
    %562 = arith.mulf %561, %553 : vector<8x128xf32>
    %563 = arith.addf %560, %562 : vector<8x128xf32>
    %564 = arith.mulf %312, %330 : vector<8x128xf32>
    %565 = arith.mulf %315, %333 : vector<8x128xf32>
    %566 = arith.subf %564, %565 : vector<8x128xf32>
    %567 = arith.mulf %312, %333 : vector<8x128xf32>
    %568 = arith.mulf %315, %330 : vector<8x128xf32>
    %569 = arith.addf %567, %568 : vector<8x128xf32>
    %570 = vector.broadcast %14 : f32 to vector<8x128xf32>
    %571 = arith.mulf %570, %566 : vector<8x128xf32>
    %572 = vector.broadcast %30 : f32 to vector<8x128xf32>
    %573 = arith.mulf %572, %569 : vector<8x128xf32>
    %574 = arith.subf %571, %573 : vector<8x128xf32>
    %575 = vector.broadcast %30 : f32 to vector<8x128xf32>
    %576 = arith.mulf %575, %566 : vector<8x128xf32>
    %577 = vector.broadcast %14 : f32 to vector<8x128xf32>
    %578 = arith.mulf %577, %569 : vector<8x128xf32>
    %579 = arith.addf %576, %578 : vector<8x128xf32>
    %580 = arith.mulf %312, %336 : vector<8x128xf32>
    %581 = arith.mulf %315, %339 : vector<8x128xf32>
    %582 = arith.subf %580, %581 : vector<8x128xf32>
    %583 = arith.mulf %312, %339 : vector<8x128xf32>
    %584 = arith.mulf %315, %336 : vector<8x128xf32>
    %585 = arith.addf %583, %584 : vector<8x128xf32>
    %586 = vector.broadcast %15 : f32 to vector<8x128xf32>
    %587 = arith.mulf %586, %582 : vector<8x128xf32>
    %588 = vector.broadcast %31 : f32 to vector<8x128xf32>
    %589 = arith.mulf %588, %585 : vector<8x128xf32>
    %590 = arith.subf %587, %589 : vector<8x128xf32>
    %591 = vector.broadcast %31 : f32 to vector<8x128xf32>
    %592 = arith.mulf %591, %582 : vector<8x128xf32>
    %593 = vector.broadcast %15 : f32 to vector<8x128xf32>
    %594 = arith.mulf %593, %585 : vector<8x128xf32>
    %595 = arith.addf %592, %594 : vector<8x128xf32>
    %596 = arith.mulf %350, %478 : vector<8x128xf32>
    %597 = arith.mulf %355, %483 : vector<8x128xf32>
    %598 = arith.addf %596, %597 : vector<8x128xf32>
    %599 = arith.mulf %366, %494 : vector<8x128xf32>
    %600 = arith.mulf %371, %499 : vector<8x128xf32>
    %601 = arith.addf %599, %600 : vector<8x128xf32>
    %602 = arith.addf %598, %601 : vector<8x128xf32>
    %603 = arith.mulf %382, %510 : vector<8x128xf32>
    %604 = arith.mulf %387, %515 : vector<8x128xf32>
    %605 = arith.addf %603, %604 : vector<8x128xf32>
    %606 = arith.addf %602, %605 : vector<8x128xf32>
    %607 = arith.mulf %398, %526 : vector<8x128xf32>
    %608 = arith.mulf %403, %531 : vector<8x128xf32>
    %609 = arith.addf %607, %608 : vector<8x128xf32>
    %610 = arith.addf %606, %609 : vector<8x128xf32>
    %611 = arith.mulf %414, %542 : vector<8x128xf32>
    %612 = arith.mulf %419, %547 : vector<8x128xf32>
    %613 = arith.addf %611, %612 : vector<8x128xf32>
    %614 = arith.addf %610, %613 : vector<8x128xf32>
    %615 = arith.mulf %430, %558 : vector<8x128xf32>
    %616 = arith.mulf %435, %563 : vector<8x128xf32>
    %617 = arith.addf %615, %616 : vector<8x128xf32>
    %618 = arith.addf %614, %617 : vector<8x128xf32>
    %619 = arith.mulf %446, %574 : vector<8x128xf32>
    %620 = arith.mulf %451, %579 : vector<8x128xf32>
    %621 = arith.addf %619, %620 : vector<8x128xf32>
    %622 = arith.addf %618, %621 : vector<8x128xf32>
    %623 = arith.mulf %462, %590 : vector<8x128xf32>
    %624 = arith.mulf %467, %595 : vector<8x128xf32>
    %625 = arith.addf %623, %624 : vector<8x128xf32>
    %626 = arith.addf %622, %625 : vector<8x128xf32>
    %627 = arith.mulf %350, %414 : vector<8x128xf32>
    %628 = arith.mulf %355, %419 : vector<8x128xf32>
    %629 = arith.addf %627, %628 : vector<8x128xf32>
    %630 = arith.mulf %366, %430 : vector<8x128xf32>
    %631 = arith.mulf %371, %435 : vector<8x128xf32>
    %632 = arith.addf %630, %631 : vector<8x128xf32>
    %633 = arith.addf %629, %632 : vector<8x128xf32>
    %634 = arith.mulf %382, %446 : vector<8x128xf32>
    %635 = arith.mulf %387, %451 : vector<8x128xf32>
    %636 = arith.addf %634, %635 : vector<8x128xf32>
    %637 = arith.addf %633, %636 : vector<8x128xf32>
    %638 = arith.mulf %398, %462 : vector<8x128xf32>
    %639 = arith.mulf %403, %467 : vector<8x128xf32>
    %640 = arith.addf %638, %639 : vector<8x128xf32>
    %641 = arith.addf %637, %640 : vector<8x128xf32>
    %642 = arith.mulf %478, %542 : vector<8x128xf32>
    %643 = arith.mulf %483, %547 : vector<8x128xf32>
    %644 = arith.addf %642, %643 : vector<8x128xf32>
    %645 = arith.addf %641, %644 : vector<8x128xf32>
    %646 = arith.mulf %494, %558 : vector<8x128xf32>
    %647 = arith.mulf %499, %563 : vector<8x128xf32>
    %648 = arith.addf %646, %647 : vector<8x128xf32>
    %649 = arith.addf %645, %648 : vector<8x128xf32>
    %650 = arith.mulf %510, %574 : vector<8x128xf32>
    %651 = arith.mulf %515, %579 : vector<8x128xf32>
    %652 = arith.addf %650, %651 : vector<8x128xf32>
    %653 = arith.addf %649, %652 : vector<8x128xf32>
    %654 = arith.mulf %526, %590 : vector<8x128xf32>
    %655 = arith.mulf %531, %595 : vector<8x128xf32>
    %656 = arith.addf %654, %655 : vector<8x128xf32>
    %657 = arith.addf %653, %656 : vector<8x128xf32>
    %658 = arith.mulf %350, %382 : vector<8x128xf32>
    %659 = arith.mulf %355, %387 : vector<8x128xf32>
    %660 = arith.addf %658, %659 : vector<8x128xf32>
    %661 = arith.mulf %366, %398 : vector<8x128xf32>
    %662 = arith.mulf %371, %403 : vector<8x128xf32>
    %663 = arith.addf %661, %662 : vector<8x128xf32>
    %664 = arith.addf %660, %663 : vector<8x128xf32>
    %665 = arith.mulf %414, %446 : vector<8x128xf32>
    %666 = arith.mulf %419, %451 : vector<8x128xf32>
    %667 = arith.addf %665, %666 : vector<8x128xf32>
    %668 = arith.addf %664, %667 : vector<8x128xf32>
    %669 = arith.mulf %430, %462 : vector<8x128xf32>
    %670 = arith.mulf %435, %467 : vector<8x128xf32>
    %671 = arith.addf %669, %670 : vector<8x128xf32>
    %672 = arith.addf %668, %671 : vector<8x128xf32>
    %673 = arith.mulf %478, %510 : vector<8x128xf32>
    %674 = arith.mulf %483, %515 : vector<8x128xf32>
    %675 = arith.addf %673, %674 : vector<8x128xf32>
    %676 = arith.addf %672, %675 : vector<8x128xf32>
    %677 = arith.mulf %494, %526 : vector<8x128xf32>
    %678 = arith.mulf %499, %531 : vector<8x128xf32>
    %679 = arith.addf %677, %678 : vector<8x128xf32>
    %680 = arith.addf %676, %679 : vector<8x128xf32>
    %681 = arith.mulf %542, %574 : vector<8x128xf32>
    %682 = arith.mulf %547, %579 : vector<8x128xf32>
    %683 = arith.addf %681, %682 : vector<8x128xf32>
    %684 = arith.addf %680, %683 : vector<8x128xf32>
    %685 = arith.mulf %558, %590 : vector<8x128xf32>
    %686 = arith.mulf %563, %595 : vector<8x128xf32>
    %687 = arith.addf %685, %686 : vector<8x128xf32>
    %688 = arith.addf %684, %687 : vector<8x128xf32>
    %689 = arith.mulf %350, %366 : vector<8x128xf32>
    %690 = arith.mulf %355, %371 : vector<8x128xf32>
    %691 = arith.addf %689, %690 : vector<8x128xf32>
    %692 = arith.mulf %382, %398 : vector<8x128xf32>
    %693 = arith.mulf %387, %403 : vector<8x128xf32>
    %694 = arith.addf %692, %693 : vector<8x128xf32>
    %695 = arith.addf %691, %694 : vector<8x128xf32>
    %696 = arith.mulf %414, %430 : vector<8x128xf32>
    %697 = arith.mulf %419, %435 : vector<8x128xf32>
    %698 = arith.addf %696, %697 : vector<8x128xf32>
    %699 = arith.addf %695, %698 : vector<8x128xf32>
    %700 = arith.mulf %446, %462 : vector<8x128xf32>
    %701 = arith.mulf %451, %467 : vector<8x128xf32>
    %702 = arith.addf %700, %701 : vector<8x128xf32>
    %703 = arith.addf %699, %702 : vector<8x128xf32>
    %704 = arith.mulf %478, %494 : vector<8x128xf32>
    %705 = arith.mulf %483, %499 : vector<8x128xf32>
    %706 = arith.addf %704, %705 : vector<8x128xf32>
    %707 = arith.addf %703, %706 : vector<8x128xf32>
    %708 = arith.mulf %510, %526 : vector<8x128xf32>
    %709 = arith.mulf %515, %531 : vector<8x128xf32>
    %710 = arith.addf %708, %709 : vector<8x128xf32>
    %711 = arith.addf %707, %710 : vector<8x128xf32>
    %712 = arith.mulf %542, %558 : vector<8x128xf32>
    %713 = arith.mulf %547, %563 : vector<8x128xf32>
    %714 = arith.addf %712, %713 : vector<8x128xf32>
    %715 = arith.addf %711, %714 : vector<8x128xf32>
    %716 = arith.mulf %574, %590 : vector<8x128xf32>
    %717 = arith.mulf %579, %595 : vector<8x128xf32>
    %718 = arith.addf %716, %717 : vector<8x128xf32>
    %719 = arith.addf %715, %718 : vector<8x128xf32>
    %720 = arith.mulf %350, %350 : vector<8x128xf32>
    %721 = arith.mulf %355, %355 : vector<8x128xf32>
    %722 = arith.addf %720, %721 : vector<8x128xf32>
    %723 = arith.mulf %366, %366 : vector<8x128xf32>
    %724 = arith.mulf %371, %371 : vector<8x128xf32>
    %725 = arith.addf %723, %724 : vector<8x128xf32>
    %726 = arith.mulf %382, %382 : vector<8x128xf32>
    %727 = arith.mulf %387, %387 : vector<8x128xf32>
    %728 = arith.addf %726, %727 : vector<8x128xf32>
    %729 = arith.mulf %398, %398 : vector<8x128xf32>
    %730 = arith.mulf %403, %403 : vector<8x128xf32>
    %731 = arith.addf %729, %730 : vector<8x128xf32>
    %732 = arith.mulf %414, %414 : vector<8x128xf32>
    %733 = arith.mulf %419, %419 : vector<8x128xf32>
    %734 = arith.addf %732, %733 : vector<8x128xf32>
    %735 = arith.mulf %430, %430 : vector<8x128xf32>
    %736 = arith.mulf %435, %435 : vector<8x128xf32>
    %737 = arith.addf %735, %736 : vector<8x128xf32>
    %738 = arith.mulf %446, %446 : vector<8x128xf32>
    %739 = arith.mulf %451, %451 : vector<8x128xf32>
    %740 = arith.addf %738, %739 : vector<8x128xf32>
    %741 = arith.mulf %462, %462 : vector<8x128xf32>
    %742 = arith.mulf %467, %467 : vector<8x128xf32>
    %743 = arith.addf %741, %742 : vector<8x128xf32>
    %744 = arith.mulf %478, %478 : vector<8x128xf32>
    %745 = arith.mulf %483, %483 : vector<8x128xf32>
    %746 = arith.addf %744, %745 : vector<8x128xf32>
    %747 = arith.mulf %494, %494 : vector<8x128xf32>
    %748 = arith.mulf %499, %499 : vector<8x128xf32>
    %749 = arith.addf %747, %748 : vector<8x128xf32>
    %750 = arith.mulf %510, %510 : vector<8x128xf32>
    %751 = arith.mulf %515, %515 : vector<8x128xf32>
    %752 = arith.addf %750, %751 : vector<8x128xf32>
    %753 = arith.mulf %526, %526 : vector<8x128xf32>
    %754 = arith.mulf %531, %531 : vector<8x128xf32>
    %755 = arith.addf %753, %754 : vector<8x128xf32>
    %756 = arith.mulf %542, %542 : vector<8x128xf32>
    %757 = arith.mulf %547, %547 : vector<8x128xf32>
    %758 = arith.addf %756, %757 : vector<8x128xf32>
    %759 = arith.mulf %558, %558 : vector<8x128xf32>
    %760 = arith.mulf %563, %563 : vector<8x128xf32>
    %761 = arith.addf %759, %760 : vector<8x128xf32>
    %762 = arith.mulf %574, %574 : vector<8x128xf32>
    %763 = arith.mulf %579, %579 : vector<8x128xf32>
    %764 = arith.addf %762, %763 : vector<8x128xf32>
    %765 = arith.mulf %590, %590 : vector<8x128xf32>
    %766 = arith.mulf %595, %595 : vector<8x128xf32>
    %767 = arith.addf %765, %766 : vector<8x128xf32>
    %768 = arith.subf %722, %725 : vector<8x128xf32>
    %769 = arith.subf %728, %731 : vector<8x128xf32>
    %770 = arith.subf %734, %737 : vector<8x128xf32>
    %771 = arith.subf %740, %743 : vector<8x128xf32>
    %772 = arith.subf %746, %749 : vector<8x128xf32>
    %773 = arith.subf %752, %755 : vector<8x128xf32>
    %774 = arith.subf %758, %761 : vector<8x128xf32>
    %775 = arith.subf %764, %767 : vector<8x128xf32>
    %776 = arith.addf %768, %769 : vector<8x128xf32>
    %777 = arith.addf %776, %770 : vector<8x128xf32>
    %778 = arith.addf %777, %771 : vector<8x128xf32>
    %779 = arith.addf %778, %772 : vector<8x128xf32>
    %780 = arith.addf %779, %773 : vector<8x128xf32>
    %781 = arith.addf %780, %774 : vector<8x128xf32>
    %782 = arith.addf %781, %775 : vector<8x128xf32>
    %783 = arith.addf %722, %725 : vector<8x128xf32>
    %784 = arith.addf %728, %731 : vector<8x128xf32>
    %785 = arith.addf %734, %737 : vector<8x128xf32>
    %786 = arith.addf %740, %743 : vector<8x128xf32>
    %787 = arith.addf %746, %749 : vector<8x128xf32>
    %788 = arith.addf %752, %755 : vector<8x128xf32>
    %789 = arith.addf %758, %761 : vector<8x128xf32>
    %790 = arith.addf %764, %767 : vector<8x128xf32>
    %791 = arith.subf %783, %784 : vector<8x128xf32>
    %792 = arith.subf %785, %786 : vector<8x128xf32>
    %793 = arith.subf %787, %788 : vector<8x128xf32>
    %794 = arith.subf %789, %790 : vector<8x128xf32>
    %795 = arith.addf %791, %792 : vector<8x128xf32>
    %796 = arith.addf %795, %793 : vector<8x128xf32>
    %797 = arith.addf %796, %794 : vector<8x128xf32>
    %798 = arith.addf %783, %784 : vector<8x128xf32>
    %799 = arith.addf %785, %786 : vector<8x128xf32>
    %800 = arith.addf %787, %788 : vector<8x128xf32>
    %801 = arith.addf %789, %790 : vector<8x128xf32>
    %802 = arith.subf %798, %799 : vector<8x128xf32>
    %803 = arith.subf %800, %801 : vector<8x128xf32>
    %804 = arith.addf %802, %803 : vector<8x128xf32>
    %805 = arith.addf %798, %799 : vector<8x128xf32>
    %806 = arith.addf %800, %801 : vector<8x128xf32>
    %807 = arith.subf %805, %806 : vector<8x128xf32>
    %808 = vector.broadcast %32 : f32 to vector<8x128xf32>
    %809 = arith.mulf %808, %807 : vector<8x128xf32>
    %810 = vector.broadcast %36 : f32 to vector<8x128xf32>
    %811 = arith.mulf %810, %626 : vector<8x128xf32>
    %812 = arith.subf %809, %811 : vector<8x128xf32>
    %c0_76 = arith.constant 0 : index
    %813 = arith.index_cast %43 : i32 to index
    %c0_77 = arith.constant 0 : index
    %814 = vector.load %arg6[%c0_76, %813, %c0_77] : memref<4x8x128xf32, #tpu.memory_space<vmem>>, vector<1x8x128xf32>
    %815 = vector.shape_cast %814 : vector<1x8x128xf32> to vector<8x128xf32>
    %816 = vector.shape_cast %812 : vector<8x128xf32> to vector<1x8x128xf32>
    tpu.vector_store %arg6[%c0_76, %813, %c0_77], %816 {strides = array<i32>} : memref<4x8x128xf32, #tpu.memory_space<vmem>>, vector<1x8x128xf32>,
    %817 = vector.broadcast %33 : f32 to vector<8x128xf32>
    %818 = arith.mulf %817, %804 : vector<8x128xf32>
    %819 = vector.broadcast %37 : f32 to vector<8x128xf32>
    %820 = arith.mulf %819, %657 : vector<8x128xf32>
    %821 = arith.subf %818, %820 : vector<8x128xf32>
    %c1_78 = arith.constant 1 : index
    %822 = arith.index_cast %43 : i32 to index
    %c0_79 = arith.constant 0 : index
    %823 = vector.load %arg6[%c1_78, %822, %c0_79] : memref<4x8x128xf32, #tpu.memory_space<vmem>>, vector<1x8x128xf32>
    %824 = vector.shape_cast %823 : vector<1x8x128xf32> to vector<8x128xf32>
    %825 = vector.shape_cast %821 : vector<8x128xf32> to vector<1x8x128xf32>
    tpu.vector_store %arg6[%c1_78, %822, %c0_79], %825 {strides = array<i32>} : memref<4x8x128xf32, #tpu.memory_space<vmem>>, vector<1x8x128xf32>,
    %826 = vector.broadcast %34 : f32 to vector<8x128xf32>
    %827 = arith.mulf %826, %797 : vector<8x128xf32>
    %828 = vector.broadcast %38 : f32 to vector<8x128xf32>
    %829 = arith.mulf %828, %688 : vector<8x128xf32>
    %830 = arith.subf %827, %829 : vector<8x128xf32>
    %c2_80 = arith.constant 2 : index
    %831 = arith.index_cast %43 : i32 to index
    %c0_81 = arith.constant 0 : index
    %832 = vector.load %arg6[%c2_80, %831, %c0_81] : memref<4x8x128xf32, #tpu.memory_space<vmem>>, vector<1x8x128xf32>
    %833 = vector.shape_cast %832 : vector<1x8x128xf32> to vector<8x128xf32>
    %834 = vector.shape_cast %830 : vector<8x128xf32> to vector<1x8x128xf32>
    tpu.vector_store %arg6[%c2_80, %831, %c0_81], %834 {strides = array<i32>} : memref<4x8x128xf32, #tpu.memory_space<vmem>>, vector<1x8x128xf32>,
    %835 = vector.broadcast %35 : f32 to vector<8x128xf32>
    %836 = arith.mulf %835, %782 : vector<8x128xf32>
    %837 = vector.broadcast %39 : f32 to vector<8x128xf32>
    %838 = arith.mulf %837, %719 : vector<8x128xf32>
    %839 = arith.subf %836, %838 : vector<8x128xf32>
    %c3_82 = arith.constant 3 : index
    %840 = arith.index_cast %43 : i32 to index
    %c0_83 = arith.constant 0 : index
    %841 = vector.load %arg6[%c3_82, %840, %c0_83] : memref<4x8x128xf32, #tpu.memory_space<vmem>>, vector<1x8x128xf32>
    %842 = vector.shape_cast %841 : vector<1x8x128xf32> to vector<8x128xf32>
    %843 = vector.shape_cast %839 : vector<8x128xf32> to vector<1x8x128xf32>
    tpu.vector_store %arg6[%c3_82, %840, %c0_83], %843 {strides = array<i32>} : memref<4x8x128xf32, #tpu.memory_space<vmem>>, vector<1x8x128xf32>,
    %c1_i32_84 = arith.constant 1 : i32
    return
  }
  func.func @transform_0(%arg0: i32) -> (i32, i32, i32) {
    %c0_i32 = arith.constant 0 : i32
    %c0_i32_0 = arith.constant 0 : i32
    %c0_i32_1 = arith.constant 0 : i32
    return %c0_i32, %arg0, %c0_i32_0 : i32, i32, i32
  }
  func.func @transform_1(%arg0: i32) -> i32 {
    %c0_i32 = arith.constant 0 : i32
    %c0_i32_0 = arith.constant 0 : i32
    return %c0_i32 : i32
  }
  func.func @transform_2(%arg0: i32) -> i32 {
    %c0_i32 = arith.constant 0 : i32
    %c0_i32_0 = arith.constant 0 : i32
    return %c0_i32 : i32
  }
  func.func @transform_3(%arg0: i32) -> i32 {
    %c0_i32 = arith.constant 0 : i32
    %c0_i32_0 = arith.constant 0 : i32
    return %c0_i32 : i32
  }
  func.func @transform_4(%arg0: i32) -> i32 {
    %c0_i32 = arith.constant 0 : i32
    %c0_i32_0 = arith.constant 0 : i32
    return %c0_i32 : i32
  }
  func.func @transform_5(%arg0: i32) -> (i32, i32, i32) {
    %c0_i32 = arith.constant 0 : i32
    %c0_i32_0 = arith.constant 0 : i32
    %c0_i32_1 = arith.constant 0 : i32
    return %c0_i32, %arg0, %c0_i32_0 : i32, i32, i32
  }
}

</mosaic_0001>

<llo_original>
// kernel: tpu_custom_call.1
$region0: #{tpu_custom_call.1}
  #allocation0 [shape = 'u32[]', space=smem, size = 0x4, offset = 0x4, fixed_abs, tag = 'smem constant byte address 0x4 - core index']
  #allocation1 [shape = 'u32[144,128]{1,0:T(1,128)}', space=vmem, size = 0x12000, scoped, tag = 'internal scratch']
  %s0 = inlined_call_operand.hbm [shape: f32[32,8,128], index: 0, kind: input, shape index: {}]
  %s1 = inlined_call_operand.vmem [shape: f32[16], index: 1, kind: input, shape index: {}]
  %s2 = inlined_call_operand.vmem [shape: f32[16], index: 2, kind: input, shape index: {}]
  %s3 = inlined_call_operand.vmem [shape: f32[4], index: 3, kind: input, shape index: {}]
  %s4 = inlined_call_operand.vmem [shape: f32[4], index: 4, kind: input, shape index: {}]
  %s5 = inlined_call_operand.hbm [shape: f32[4,8,128], index: 5, kind: output, shape index: {}]
  %s6 = sld [smem:[#allocation0]]
  $region50: #{tpu_custom_call.1} parent=0
    _
  %s8 = ssub.s32 1, %s6
  %s9 = scalar_select 0, %s8, %s6
  $region1: #{tpu_custom_call.1} parent=0
    #allocation2 [shape = 'u8[131072]{0}', space=vmem, size = 0x20000, scoped, tag = 'input window, operand 0, single buffered']
    #allocation3 [shape = 's32[1]{0}', space=sflag, size = 0x4, scoped, tag = 'scoped memory for tpu_custom_call.1']
    #allocation4 [shape = 's32[1]{0}', space=sflag, size = 0x4, scoped, tag = 'scoped memory for tpu_custom_call.1']
    #allocation5 [shape = 's32[1]{0}', space=sflag, size = 0x4, scoped, tag = 'scoped memory for tpu_custom_call.1']
    #allocation6 [shape = 'u8[512]{0}', space=smem, size = 0x200, scoped, tag = 'input window, operand 1, single buffered']
    #allocation7 [shape = 'u8[512]{0}', space=smem, size = 0x200, scoped, tag = 'input window, operand 2, single buffered']
    #allocation8 [shape = 's32[1]{0}', space=sflag, size = 0x4, scoped, tag = 'scoped memory for tpu_custom_call.1']
    #allocation9 [shape = 'u8[512]{0}', space=smem, size = 0x200, scoped, tag = 'input window, operand 3, single buffered']
    #allocation10 [shape = 'u8[512]{0}', space=smem, size = 0x200, scoped, tag = 'input window, operand 4, single buffered']
    #allocation11 [shape = 's32[1]{0}', space=sflag, size = 0x4, scoped, tag = 'scoped memory for tpu_custom_call.1']
    #allocation12 [shape = 'u8[16384]{0}', space=vmem, size = 0x4000, scoped, tag = 'output window, operand 0, single buffered']
    %10 = vsyncpa [#allocation3], 0
    %11 = vsyncpa [#allocation5], 0
    %12 = vsyncpa [#allocation8], 0
    %13 = vsyncpa [#allocation11], 0
    %14 = vsyncpa [#allocation4], 0
    // Predicated region
    $region2: #{tpu_custom_call.1} parent=1 // pred_check
      _
    $region3: #{tpu_custom_call.1} parent=1 // pred_check_branch
      %16 = sbr.rel (0) target = $region5
    $region4: #{tpu_custom_call.1} parent=1 // pred_region
      %s18 = ssub.s32 4096, 4096
      %19 = vsyncadd [#allocation3], %s18
      %s20 = sshll.u32 [#allocation2], 4
      %s21 = int_to_ptr.vmem [resolvable:$true] %s20
      %26 = dma.hbm_to_vmem [thread:$0]  %s0, 4096, %s21, [#allocation3], 128, 128, 8
    $region5: #{tpu_custom_call.1} parent=1 // pred_fallthru
      _
    // Predicated region
    $region6: #{tpu_custom_call.1} parent=1 // pred_check
      _
    $region7: #{tpu_custom_call.1} parent=1 // pred_check_branch
      %28 = sbr.rel (0) target = $region9
    $region8: #{tpu_custom_call.1} parent=1 // pred_region
      %s30 = ssub.s32 16, 16
      %31 = vsyncadd [#allocation5], %s30
      %s33 = sshll.u32 %s1, 4
      %s34 = int_to_ptr.vmem [resolvable:$true] %s33
      %36 = dma.vmem_to_smem %s34, 16, [#allocation6], [#allocation5]
    $region9: #{tpu_custom_call.1} parent=1 // pred_fallthru
      _
    // Predicated region
    $region10: #{tpu_custom_call.1} parent=1 // pred_check
      _
    $region11: #{tpu_custom_call.1} parent=1 // pred_check_branch
      %38 = sbr.rel (0) target = $region13
    $region12: #{tpu_custom_call.1} parent=1 // pred_region
      %s40 = ssub.s32 16, 16
      %41 = vsyncadd [#allocation8], %s40
      %s43 = sshll.u32 %s2, 4
      %s44 = int_to_ptr.vmem [resolvable:$true] %s43
      %46 = dma.vmem_to_smem %s44, 16, [#allocation7], [#allocation8]
    $region13: #{tpu_custom_call.1} parent=1 // pred_fallthru
      _
    // Predicated region
    $region14: #{tpu_custom_call.1} parent=1 // pred_check
      _
    $region15: #{tpu_custom_call.1} parent=1 // pred_check_branch
      %48 = sbr.rel (0) target = $region17
    $region16: #{tpu_custom_call.1} parent=1 // pred_region
      %s50 = ssub.s32 16, 16
      %51 = vsyncadd [#allocation8], %s50
      %s53 = sshll.u32 %s3, 4
      %s54 = int_to_ptr.vmem [resolvable:$true] %s53
      %56 = dma.vmem_to_smem %s54, 16, [#allocation9], [#allocation8]
    $region17: #{tpu_custom_call.1} parent=1 // pred_fallthru
      _
    // Predicated region
    $region18: #{tpu_custom_call.1} parent=1 // pred_check
      _
    $region19: #{tpu_custom_call.1} parent=1 // pred_check_branch
      %58 = sbr.rel (0) target = $region21
    $region20: #{tpu_custom_call.1} parent=1 // pred_region
      %s60 = ssub.s32 16, 16
      %61 = vsyncadd [#allocation11], %s60
      %s63 = sshll.u32 %s4, 4
      %s64 = int_to_ptr.vmem [resolvable:$true] %s63
      %66 = dma.vmem_to_smem %s64, 16, [#allocation10], [#allocation11]
    $region21: #{tpu_custom_call.1} parent=1 // pred_fallthru
      _
    // Predicated region
    $region22: #{tpu_custom_call.1} parent=1 // pred_check
      _
    $region23: #{tpu_custom_call.1} parent=1 // pred_check_branch
      %68 = sbr.rel (0) target = $region25
    $region24: #{tpu_custom_call.1} parent=1 // pred_region
      %69 = dma.done [#allocation3], 4096
    $region25: #{tpu_custom_call.1} parent=1 // pred_fallthru
      _
    // Predicated region
    $region26: #{tpu_custom_call.1} parent=1 // pred_check
      _
    $region27: #{tpu_custom_call.1} parent=1 // pred_check_branch
      %71 = sbr.rel (0) target = $region29
    $region28: #{tpu_custom_call.1} parent=1 // pred_region
      %72 = dma.done [#allocation5], 16
    $region29: #{tpu_custom_call.1} parent=1 // pred_fallthru
      _
    // Predicated region
    $region30: #{tpu_custom_call.1} parent=1 // pred_check
      _
    $region31: #{tpu_custom_call.1} parent=1 // pred_check_branch
      %74 = sbr.rel (0) target = $region33
    $region32: #{tpu_custom_call.1} parent=1 // pred_region
      %75 = dma.done [#allocation8], 16
    $region33: #{tpu_custom_call.1} parent=1 // pred_fallthru
      _
    // Predicated region
    $region34: #{tpu_custom_call.1} parent=1 // pred_check
      _
    $region35: #{tpu_custom_call.1} parent=1 // pred_check_branch
      %77 = sbr.rel (0) target = $region37
    $region36: #{tpu_custom_call.1} parent=1 // pred_region
      %78 = dma.done [#allocation8], 16
    $region37: #{tpu_custom_call.1} parent=1 // pred_fallthru
      _
    // Predicated region
    $region38: #{tpu_custom_call.1} parent=1 // pred_check
      _
    $region39: #{tpu_custom_call.1} parent=1 // pred_check_branch
      %80 = sbr.rel (0) target = $region41
    $region40: #{tpu_custom_call.1} parent=1 // pred_region
      %81 = dma.done [#allocation11], 16
    $region41: #{tpu_custom_call.1} parent=1 // pred_fallthru
      _
    %82 = sfence
    %s83 = sld [smem:[#allocation6]]
    %s84 = sld [smem:[#allocation6 + $0x1]]
    %s85 = sld [smem:[#allocation6 + $0x2]]
    %s86 = sld [smem:[#allocation6 + $0x3]]
    %s87 = sld [smem:[#allocation6 + $0x4]]
    %s88 = sld [smem:[#allocation6 + $0x5]]
    %s89 = sld [smem:[#allocation6 + $0x6]]
    %s90 = sld [smem:[#allocation6 + $0x7]]
    %s91 = sld [smem:[#allocation6 + $0x8]]
    %s92 = sld [smem:[#allocation6 + $0x9]]
    %s93 = sld [smem:[#allocation6 + $0xa]]
    %s94 = sld [smem:[#allocation6 + $0xb]]
    %s95 = sld [smem:[#allocation6 + $0xc]]
    %s96 = sld [smem:[#allocation6 + $0xd]]
    %s97 = sld [smem:[#allocation6 + $0xe]]
    %s98 = sld [smem:[#allocation6 + $0xf]]
    %s99 = sld [smem:[#allocation7]]
    %s100 = sld [smem:[#allocation7 + $0x1]]
    %s101 = sld [smem:[#allocation7 + $0x2]]
    %s102 = sld [smem:[#allocation7 + $0x3]]
    %s103 = sld [smem:[#allocation7 + $0x4]]
    %s104 = sld [smem:[#allocation7 + $0x5]]
    %s105 = sld [smem:[#allocation7 + $0x6]]
    %s106 = sld [smem:[#allocation7 + $0x7]]
    %s107 = sld [smem:[#allocation7 + $0x8]]
    %s108 = sld [smem:[#allocation7 + $0x9]]
    %s109 = sld [smem:[#allocation7 + $0xa]]
    %s110 = sld [smem:[#allocation7 + $0xb]]
    %s111 = sld [smem:[#allocation7 + $0xc]]
    %s112 = sld [smem:[#allocation7 + $0xd]]
    %s113 = sld [smem:[#allocation7 + $0xe]]
    %s114 = sld [smem:[#allocation7 + $0xf]]
    %s115 = sld [smem:[#allocation9]]
    %s116 = sld [smem:[#allocation9 + $0x1]]
    %s117 = sld [smem:[#allocation9 + $0x2]]
    %s118 = sld [smem:[#allocation9 + $0x3]]
    %s119 = sld [smem:[#allocation10]]
    %s120 = sld [smem:[#allocation10 + $0x1]]
    %s121 = sld [smem:[#allocation10 + $0x2]]
    %s122 = sld [smem:[#allocation10 + $0x3]]
    %v123 = vld [vmem:[#allocation2] sm:$0xff]
    %s124 = sadd.s32 0, 128
    %s125 = scalar_lea.vmem [#allocation2], %s124
    %v126 = vld [vmem:[%s125] sm:$0xff]
    %v127 = vsub.f32 0.0, %v126
    %s128 = sadd.s32 0, 8
    %s129 = scalar_lea.vmem [#allocation2], %s128
    %v130 = vld [vmem:[%s129] sm:$0xff]
    %s131 = sadd.s32 0, 136
    %s132 = scalar_lea.vmem [#allocation2], %s131
    %v133 = vld [vmem:[%s132] sm:$0xff]
    %v134 = vmul.f32 %v130, %v123
    %v135 = vmul.f32 %v133, %v123
    %v136 = vsub.f32 %v134, %v135
    %v137 = vadd.f32 %v135, %v134
    %v138 = vmul.f32 %v130, %v127
    %v139 = vmul.f32 %v133, %v126
    %v140 = vsub.f32 %v138, %v139
    %v141 = vmul.f32 %v133, %v127
    %v142 = vmul.f32 %v130, %v126
    %v143 = vadd.f32 %v141, %v142
    %s144 = sadd.s32 0, 16
    %s145 = scalar_lea.vmem [#allocation2], %s144
    %v146 = vld [vmem:[%s145] sm:$0xff]
    %s147 = sadd.s32 0, 144
    %s148 = scalar_lea.vmem [#allocation2], %s147
    %v149 = vld [vmem:[%s148] sm:$0xff]
    %v150 = vmul.f32 %v146, %v136
    %v151 = vmul.f32 %v149, %v140
    %v152 = vadd.f32 %v150, %v151
    %v153 = vmul.f32 %v146, %v140
    %v154 = vmul.f32 %v149, %v136
    %v155 = vsub.f32 %v153, %v154
    %v156 = vmul.f32 %v146, %v137
    %v157 = vmul.f32 %v149, %v143
    %v158 = vsub.f32 %v156, %v157
    %v159 = vmul.f32 %v146, %v143
    %v160 = vmul.f32 %v149, %v137
    %v161 = vadd.f32 %v159, %v160
    %s162 = sadd.s32 0, 24
    %s163 = scalar_lea.vmem [#allocation2], %s162
    %v164 = vld [vmem:[%s163] sm:$0xff]
    %s165 = sadd.s32 0, 152
    %s166 = scalar_lea.vmem [#allocation2], %s165
    %v167 = vld [vmem:[%s166] sm:$0xff]
    %v168 = vmul.f32 %v164, %v152
    %v169 = vmul.f32 %v167, %v158
    %v170 = vsub.f32 %v168, %v169
    %v171 = vmul.f32 %v167, %v152
    %v172 = vmul.f32 %v164, %v158
    %v173 = vadd.f32 %v171, %v172
    %v174 = vmul.f32 %v164, %v155
    %v175 = vmul.f32 %v167, %v161
    %v176 = vsub.f32 %v174, %v175
    %v177 = vmul.f32 %v167, %v155
    %v178 = vmul.f32 %v164, %v161
    %v179 = vadd.f32 %v177, %v178
    %s180 = sadd.s32 0, 32
    %s181 = scalar_lea.vmem [#allocation2], %s180
    %v182 = vld [vmem:[%s181] sm:$0xff]
    %s183 = sadd.s32 0, 160
    %s184 = scalar_lea.vmem [#allocation2], %s183
    %v185 = vld [vmem:[%s184] sm:$0xff]
    %v186 = vmul.f32 %v182, %v170
    %v187 = vmul.f32 %v185, %v176
    %v188 = vadd.f32 %v186, %v187
    %v189 = vmul.f32 %v182, %v176
    %v190 = vmul.f32 %v185, %v170
    %v191 = vsub.f32 %v189, %v190
    %v192 = vmul.f32 %v182, %v173
    %v193 = vmul.f32 %v185, %v179
    %v194 = vsub.f32 %v192, %v193
    %v195 = vmul.f32 %v182, %v179
    %v196 = vmul.f32 %v185, %v173
    %v197 = vadd.f32 %v195, %v196
    %s198 = sadd.s32 0, 40
    %s199 = scalar_lea.vmem [#allocation2], %s198
    %v200 = vld [vmem:[%s199] sm:$0xff]
    %s201 = sadd.s32 0, 168
    %s202 = scalar_lea.vmem [#allocation2], %s201
    %v203 = vld [vmem:[%s202] sm:$0xff]
    %v204 = vsub.f32 0.0, %v203
    %s205 = sadd.s32 0, 48
    %s206 = scalar_lea.vmem [#allocation2], %s205
    %v207 = vld [vmem:[%s206] sm:$0xff]
    %s208 = sadd.s32 0, 176
    %s209 = scalar_lea.vmem [#allocation2], %s208
    %v210 = vld [vmem:[%s209] sm:$0xff]
    %v211 = vmul.f32 %v207, %v200
    %v212 = vmul.f32 %v210, %v200
    %v213 = vsub.f32 %v211, %v212
    %v214 = vadd.f32 %v212, %v211
    %v215 = vmul.f32 %v207, %v204
    %v216 = vmul.f32 %v210, %v203
    %v217 = vsub.f32 %v215, %v216
    %v218 = vmul.f32 %v210, %v204
    %v219 = vmul.f32 %v207, %v203
    %v220 = vadd.f32 %v218, %v219
    %s221 = sadd.s32 0, 56
    %s222 = scalar_lea.vmem [#allocation2], %s221
    %v223 = vld [vmem:[%s222] sm:$0xff]
    %s224 = sadd.s32 0, 184
    %s225 = scalar_lea.vmem [#allocation2], %s224
    %v226 = vld [vmem:[%s225] sm:$0xff]
    %v227 = vmul.f32 %v223, %v213
    %v228 = vmul.f32 %v226, %v217
    %v229 = vadd.f32 %v227, %v228
    %v230 = vmul.f32 %v223, %v217
    %v231 = vmul.f32 %v226, %v213
    %v232 = vsub.f32 %v230, %v231
    %v233 = vmul.f32 %v223, %v214
    %v234 = vmul.f32 %v226, %v220
    %v235 = vsub.f32 %v233, %v234
    %v236 = vmul.f32 %v223, %v220
    %v237 = vmul.f32 %v226, %v214
    %v238 = vadd.f32 %v236, %v237
    %s239 = sadd.s32 0, 64
    %s240 = scalar_lea.vmem [#allocation2], %s239
    %v241 = vld [vmem:[%s240] sm:$0xff]
    %s242 = sadd.s32 0, 192
    %s243 = scalar_lea.vmem [#allocation2], %s242
    %v244 = vld [vmem:[%s243] sm:$0xff]
    %v245 = vmul.f32 %v241, %v229
    %v246 = vmul.f32 %v244, %v235
    %v247 = vsub.f32 %v245, %v246
    %v248 = vmul.f32 %v244, %v229
    %v249 = vmul.f32 %v241, %v235
    %v250 = vadd.f32 %v248, %v249
    %v251 = vmul.f32 %v241, %v232
    %v252 = vmul.f32 %v244, %v238
    %v253 = vsub.f32 %v251, %v252
    %v254 = vmul.f32 %v244, %v232
    %v255 = vmul.f32 %v241, %v238
    %v256 = vadd.f32 %v254, %v255
    %s257 = sadd.s32 0, 72
    %s258 = scalar_lea.vmem [#allocation2], %s257
    %v259 = vld [vmem:[%s258] sm:$0xff]
    %s260 = sadd.s32 0, 200
    %s261 = scalar_lea.vmem [#allocation2], %s260
    %v262 = vld [vmem:[%s261] sm:$0xff]
    %v263 = vmul.f32 %v259, %v247
    %v264 = vmul.f32 %v262, %v253
    %v265 = vadd.f32 %v263, %v264
    %v266 = vmul.f32 %v259, %v253
    %v267 = vmul.f32 %v262, %v247
    %v268 = vsub.f32 %v266, %v267
    %v269 = vmul.f32 %v259, %v250
    %v270 = vmul.f32 %v262, %v256
    %v271 = vsub.f32 %v269, %v270
    %v272 = vmul.f32 %v259, %v256
    %v273 = vmul.f32 %v262, %v250
    %v274 = vadd.f32 %v272, %v273
    %s275 = sadd.s32 0, 80
    %s276 = scalar_lea.vmem [#allocation2], %s275
    %v277 = vld [vmem:[%s276] sm:$0xff]
    %s278 = sadd.s32 0, 208
    %s279 = scalar_lea.vmem [#allocation2], %s278
    %v280 = vld [vmem:[%s279] sm:$0xff]
    %v281 = vsub.f32 0.0, %v280
    %s282 = sadd.s32 0, 88
    %s283 = scalar_lea.vmem [#allocation2], %s282
    %v284 = vld [vmem:[%s283] sm:$0xff]
    %s285 = sadd.s32 0, 216
    %s286 = scalar_lea.vmem [#allocation2], %s285
    %v287 = vld [vmem:[%s286] sm:$0xff]
    %v288 = vmul.f32 %v284, %v277
    %v289 = vmul.f32 %v287, %v277
    %v290 = vsub.f32 %v288, %v289
    %v291 = vadd.f32 %v289, %v288
    %v292 = vmul.f32 %v284, %v281
    %v293 = vmul.f32 %v287, %v280
    %v294 = vsub.f32 %v292, %v293
    %v295 = vmul.f32 %v287, %v281
    %v296 = vmul.f32 %v284, %v280
    %v297 = vadd.f32 %v295, %v296
    %s298 = sadd.s32 0, 96
    %s299 = scalar_lea.vmem [#allocation2], %s298
    %v300 = vld [vmem:[%s299] sm:$0xff]
    %s301 = sadd.s32 0, 224
    %s302 = scalar_lea.vmem [#allocation2], %s301
    %v303 = vld [vmem:[%s302] sm:$0xff]
    %v304 = vmul.f32 %v300, %v290
    %v305 = vmul.f32 %v303, %v294
    %v306 = vadd.f32 %v304, %v305
    %v307 = vmul.f32 %v300, %v294
    %v308 = vmul.f32 %v303, %v290
    %v309 = vsub.f32 %v307, %v308
    %v310 = vmul.f32 %v300, %v291
    %v311 = vmul.f32 %v303, %v297
    %v312 = vsub.f32 %v310, %v311
    %v313 = vmul.f32 %v300, %v297
    %v314 = vmul.f32 %v303, %v291
    %v315 = vadd.f32 %v313, %v314
    %s316 = sadd.s32 0, 104
    %s317 = scalar_lea.vmem [#allocation2], %s316
    %v318 = vld [vmem:[%s317] sm:$0xff]
    %s319 = sadd.s32 0, 232
    %s320 = scalar_lea.vmem [#allocation2], %s319
    %v321 = vld [vmem:[%s320] sm:$0xff]
    %v322 = vmul.f32 %v318, %v306
    %v323 = vmul.f32 %v321, %v312
    %v324 = vsub.f32 %v322, %v323
    %v325 = vmul.f32 %v321, %v306
    %v326 = vmul.f32 %v318, %v312
    %v327 = vadd.f32 %v325, %v326
    %v328 = vmul.f32 %v318, %v309
    %v329 = vmul.f32 %v321, %v315
    %v330 = vsub.f32 %v328, %v329
    %v331 = vmul.f32 %v321, %v309
    %v332 = vmul.f32 %v318, %v315
    %v333 = vadd.f32 %v331, %v332
    %s334 = sadd.s32 0, 112
    %s335 = scalar_lea.vmem [#allocation2], %s334
    %v336 = vld [vmem:[%s335] sm:$0xff]
    %s337 = sadd.s32 0, 240
    %s338 = scalar_lea.vmem [#allocation2], %s337
    %v339 = vld [vmem:[%s338] sm:$0xff]
    %v340 = vmul.f32 %v336, %v324
    %v341 = vmul.f32 %v339, %v330
    %v342 = vadd.f32 %v340, %v341
    %v343 = vmul.f32 %v336, %v330
    %v344 = vmul.f32 %v339, %v324
    %v345 = vsub.f32 %v343, %v344
    %v346 = vmul.f32 %v336, %v327
    %v347 = vmul.f32 %v339, %v333
    %v348 = vsub.f32 %v346, %v347
    %v349 = vmul.f32 %v336, %v333
    %v350 = vmul.f32 %v339, %v327
    %v351 = vadd.f32 %v349, %v350
    %s352 = sadd.s32 0, 120
    %s353 = scalar_lea.vmem [#allocation2], %s352
    %v354 = vld [vmem:[%s353] sm:$0xff]
    %s355 = sadd.s32 0, 248
    %s356 = scalar_lea.vmem [#allocation2], %s355
    %v357 = vld [vmem:[%s356] sm:$0xff]
    %v358 = vsub.f32 0.0, %v357
    %v359 = vmul.f32 %v188, %v265
    %v360 = vmul.f32 %v191, %v268
    %v361 = vsub.f32 %v359, %v360
    %v362 = vmul.f32 %v188, %v268
    %v363 = vmul.f32 %v191, %v265
    %v364 = vadd.f32 %v362, %v363
    %v365 = vmul.f32 %v188, %v271
    %v366 = vmul.f32 %v191, %v274
    %v367 = vsub.f32 %v365, %v366
    %v368 = vmul.f32 %v188, %v274
    %v369 = vmul.f32 %v191, %v271
    %v370 = vadd.f32 %v368, %v369
    %v371 = vmul.f32 %v194, %v265
    %v372 = vmul.f32 %v197, %v268
    %v373 = vsub.f32 %v371, %v372
    %v374 = vmul.f32 %v194, %v268
    %v375 = vmul.f32 %v197, %v265
    %v376 = vadd.f32 %v374, %v375
    %v377 = vmul.f32 %v194, %v271
    %v378 = vmul.f32 %v197, %v274
    %v379 = vsub.f32 %v377, %v378
    %v380 = vmul.f32 %v194, %v274
    %v381 = vmul.f32 %v197, %v271
    %v382 = vadd.f32 %v380, %v381
    %v383 = vmul.f32 %v342, %v354
    %v384 = vmul.f32 %v345, %v358
    %v385 = vsub.f32 %v383, %v384
    %v386 = vmul.f32 %v342, %v358
    %v387 = vmul.f32 %v345, %v354
    %v388 = vadd.f32 %v386, %v387
    %v389 = vmul.f32 %v345, %v357
    %v390 = vsub.f32 %v383, %v389
    %v391 = vmul.f32 %v342, %v357
    %v392 = vadd.f32 %v391, %v387
    %v393 = vmul.f32 %v348, %v354
    %v394 = vmul.f32 %v351, %v358
    %v395 = vsub.f32 %v393, %v394
    %v396 = vmul.f32 %v348, %v358
    %v397 = vmul.f32 %v351, %v354
    %v398 = vadd.f32 %v396, %v397
    %v399 = vmul.f32 %v351, %v357
    %v400 = vsub.f32 %v393, %v399
    %v401 = vmul.f32 %v348, %v357
    %v402 = vadd.f32 %v401, %v397
    %v403 = vmul.f32 %v361, %v385
    %v404 = vmul.f32 %v364, %v388
    %v405 = vsub.f32 %v403, %v404
    %v406 = vmul.f32 %v361, %v388
    %v407 = vmul.f32 %v364, %v385
    %v408 = vadd.f32 %v406, %v407
    %v409 = vstv %s83
    %v410 = vmul.f32 %v409, %v405
    %v411 = vstv %s99
    %v412 = vmul.f32 %v411, %v408
    %v413 = vsub.f32 %v410, %v412
    %v414 = vmul.f32 %v411, %v405
    %v415 = vmul.f32 %v409, %v408
    %v416 = vadd.f32 %v414, %v415
    %v417 = vmul.f32 %v361, %v390
    %v418 = vmul.f32 %v364, %v392
    %v419 = vsub.f32 %v417, %v418
    %v420 = vmul.f32 %v361, %v392
    %v421 = vmul.f32 %v364, %v390
    %v422 = vadd.f32 %v420, %v421
    %v423 = vstv %s84
    %v424 = vmul.f32 %v423, %v419
    %v425 = vstv %s100
    %v426 = vmul.f32 %v425, %v422
    %v427 = vsub.f32 %v424, %v426
    %v428 = vmul.f32 %v425, %v419
    %v429 = vmul.f32 %v423, %v422
    %v430 = vadd.f32 %v428, %v429
    %v431 = vmul.f32 %v361, %v395
    %v432 = vmul.f32 %v364, %v398
    %v433 = vsub.f32 %v431, %v432
    %v434 = vmul.f32 %v361, %v398
    %v435 = vmul.f32 %v364, %v395
    %v436 = vadd.f32 %v434, %v435
    %v437 = vstv %s85
    %v438 = vmul.f32 %v437, %v433
    %v439 = vstv %s101
    %v440 = vmul.f32 %v439, %v436
    %v441 = vsub.f32 %v438, %v440
    %v442 = vmul.f32 %v439, %v433
    %v443 = vmul.f32 %v437, %v436
    %v444 = vadd.f32 %v442, %v443
    %v445 = vmul.f32 %v361, %v400
    %v446 = vmul.f32 %v364, %v402
    %v447 = vsub.f32 %v445, %v446
    %v448 = vmul.f32 %v361, %v402
    %v449 = vmul.f32 %v364, %v400
    %v450 = vadd.f32 %v448, %v449
    %v451 = vstv %s86
    %v452 = vmul.f32 %v451, %v447
    %v453 = vstv %s102
    %v454 = vmul.f32 %v453, %v450
    %v455 = vsub.f32 %v452, %v454
    %v456 = vmul.f32 %v453, %v447
    %v457 = vmul.f32 %v451, %v450
    %v458 = vadd.f32 %v456, %v457
    %v459 = vmul.f32 %v367, %v385
    %v460 = vmul.f32 %v370, %v388
    %v461 = vsub.f32 %v459, %v460
    %v462 = vmul.f32 %v367, %v388
    %v463 = vmul.f32 %v370, %v385
    %v464 = vadd.f32 %v462, %v463
    %v465 = vstv %s87
    %v466 = vmul.f32 %v465, %v461
    %v467 = vstv %s103
    %v468 = vmul.f32 %v467, %v464
    %v469 = vsub.f32 %v466, %v468
    %v470 = vmul.f32 %v467, %v461
    %v471 = vmul.f32 %v465, %v464
    %v472 = vadd.f32 %v470, %v471
    %v473 = vmul.f32 %v367, %v390
    %v474 = vmul.f32 %v370, %v392
    %v475 = vsub.f32 %v473, %v474
    %v476 = vmul.f32 %v367, %v392
    %v477 = vmul.f32 %v370, %v390
    %v478 = vadd.f32 %v476, %v477
    %v479 = vstv %s88
    %v480 = vmul.f32 %v479, %v475
    %v481 = vstv %s104
    %v482 = vmul.f32 %v481, %v478
    %v483 = vsub.f32 %v480, %v482
    %v484 = vmul.f32 %v481, %v475
    %v485 = vmul.f32 %v479, %v478
    %v486 = vadd.f32 %v484, %v485
    %v487 = vmul.f32 %v367, %v395
    %v488 = vmul.f32 %v370, %v398
    %v489 = vsub.f32 %v487, %v488
    %v490 = vmul.f32 %v367, %v398
    %v491 = vmul.f32 %v370, %v395
    %v492 = vadd.f32 %v490, %v491
    %v493 = vstv %s89
    %v494 = vmul.f32 %v493, %v489
    %v495 = vstv %s105
    %v496 = vmul.f32 %v495, %v492
    %v497 = vsub.f32 %v494, %v496
    %v498 = vmul.f32 %v495, %v489
    %v499 = vmul.f32 %v493, %v492
    %v500 = vadd.f32 %v498, %v499
    %v501 = vmul.f32 %v367, %v400
    %v502 = vmul.f32 %v370, %v402
    %v503 = vsub.f32 %v501, %v502
    %v504 = vmul.f32 %v367, %v402
    %v505 = vmul.f32 %v370, %v400
    %v506 = vadd.f32 %v504, %v505
    %v507 = vstv %s90
    %v508 = vmul.f32 %v507, %v503
    %v509 = vstv %s106
    %v510 = vmul.f32 %v509, %v506
    %v511 = vsub.f32 %v508, %v510
    %v512 = vmul.f32 %v509, %v503
    %v513 = vmul.f32 %v507, %v506
    %v514 = vadd.f32 %v512, %v513
    %v515 = vmul.f32 %v373, %v385
    %v516 = vmul.f32 %v376, %v388
    %v517 = vsub.f32 %v515, %v516
    %v518 = vmul.f32 %v373, %v388
    %v519 = vmul.f32 %v376, %v385
    %v520 = vadd.f32 %v518, %v519
    %v521 = vstv %s91
    %v522 = vmul.f32 %v521, %v517
    %v523 = vstv %s107
    %v524 = vmul.f32 %v523, %v520
    %v525 = vsub.f32 %v522, %v524
    %v526 = vmul.f32 %v523, %v517
    %v527 = vmul.f32 %v521, %v520
    %v528 = vadd.f32 %v526, %v527
    %v529 = vmul.f32 %v373, %v390
    %v530 = vmul.f32 %v376, %v392
    %v531 = vsub.f32 %v529, %v530
    %v532 = vmul.f32 %v373, %v392
    %v533 = vmul.f32 %v376, %v390
    %v534 = vadd.f32 %v532, %v533
    %v535 = vstv %s92
    %v536 = vmul.f32 %v535, %v531
    %v537 = vstv %s108
    %v538 = vmul.f32 %v537, %v534
    %v539 = vsub.f32 %v536, %v538
    %v540 = vmul.f32 %v537, %v531
    %v541 = vmul.f32 %v535, %v534
    %v542 = vadd.f32 %v540, %v541
    %v543 = vmul.f32 %v373, %v395
    %v544 = vmul.f32 %v376, %v398
    %v545 = vsub.f32 %v543, %v544
    %v546 = vmul.f32 %v373, %v398
    %v547 = vmul.f32 %v376, %v395
    %v548 = vadd.f32 %v546, %v547
    %v549 = vstv %s93
    %v550 = vmul.f32 %v549, %v545
    %v551 = vstv %s109
    %v552 = vmul.f32 %v551, %v548
    %v553 = vsub.f32 %v550, %v552
    %v554 = vmul.f32 %v551, %v545
    %v555 = vmul.f32 %v549, %v548
    %v556 = vadd.f32 %v554, %v555
    %v557 = vmul.f32 %v373, %v400
    %v558 = vmul.f32 %v376, %v402
    %v559 = vsub.f32 %v557, %v558
    %v560 = vmul.f32 %v373, %v402
    %v561 = vmul.f32 %v376, %v400
    %v562 = vadd.f32 %v560, %v561
    %v563 = vstv %s94
    %v564 = vmul.f32 %v563, %v559
    %v565 = vstv %s110
    %v566 = vmul.f32 %v565, %v562
    %v567 = vsub.f32 %v564, %v566
    %v568 = vmul.f32 %v565, %v559
    %v569 = vmul.f32 %v563, %v562
    %v570 = vadd.f32 %v568, %v569
    %v571 = vmul.f32 %v379, %v385
    %v572 = vmul.f32 %v382, %v388
    %v573 = vsub.f32 %v571, %v572
    %v574 = vmul.f32 %v379, %v388
    %v575 = vmul.f32 %v382, %v385
    %v576 = vadd.f32 %v574, %v575
    %v577 = vstv %s95
    %v578 = vmul.f32 %v577, %v573
    %v579 = vstv %s111
    %v580 = vmul.f32 %v579, %v576
    %v581 = vsub.f32 %v578, %v580
    %v582 = vmul.f32 %v579, %v573
    %v583 = vmul.f32 %v577, %v576
    %v584 = vadd.f32 %v582, %v583
    %v585 = vmul.f32 %v379, %v390
    %v586 = vmul.f32 %v382, %v392
    %v587 = vsub.f32 %v585, %v586
    %v588 = vmul.f32 %v379, %v392
    %v589 = vmul.f32 %v382, %v390
    %v590 = vadd.f32 %v588, %v589
    %v591 = vstv %s96
    %v592 = vmul.f32 %v591, %v587
    %v593 = vstv %s112
    %v594 = vmul.f32 %v593, %v590
    %v595 = vsub.f32 %v592, %v594
    %v596 = vmul.f32 %v593, %v587
    %v597 = vmul.f32 %v591, %v590
    %v598 = vadd.f32 %v596, %v597
    %v599 = vmul.f32 %v379, %v395
    %v600 = vmul.f32 %v382, %v398
    %v601 = vsub.f32 %v599, %v600
    %v602 = vmul.f32 %v379, %v398
    %v603 = vmul.f32 %v382, %v395
    %v604 = vadd.f32 %v602, %v603
    %v605 = vstv %s97
    %v606 = vmul.f32 %v605, %v601
    %v607 = vstv %s113
    %v608 = vmul.f32 %v607, %v604
    %v609 = vsub.f32 %v606, %v608
    %v610 = vmul.f32 %v607, %v601
    %v611 = vmul.f32 %v605, %v604
    %v612 = vadd.f32 %v610, %v611
    %v613 = vmul.f32 %v379, %v400
    %v614 = vmul.f32 %v382, %v402
    %v615 = vsub.f32 %v613, %v614
    %v616 = vmul.f32 %v379, %v402
    %v617 = vmul.f32 %v382, %v400
    %v618 = vadd.f32 %v616, %v617
    %v619 = vstv %s98
    %v620 = vmul.f32 %v619, %v615
    %v621 = vstv %s114
    %v622 = vmul.f32 %v621, %v618
    %v623 = vsub.f32 %v620, %v622
    %v624 = vmul.f32 %v621, %v615
    %v625 = vmul.f32 %v619, %v618
    %v626 = vadd.f32 %v624, %v625
    %v627 = vmul.f32 %v413, %v525
    %v628 = vmul.f32 %v416, %v528
    %v629 = vadd.f32 %v627, %v628
    %v630 = vmul.f32 %v427, %v539
    %v631 = vmul.f32 %v430, %v542
    %v632 = vadd.f32 %v630, %v631
    %v633 = vadd.f32 %v629, %v632
    %v634 = vmul.f32 %v441, %v553
    %v635 = vmul.f32 %v444, %v556
    %v636 = vadd.f32 %v634, %v635
    %v637 = vadd.f32 %v633, %v636
    %v638 = vmul.f32 %v455, %v567
    %v639 = vmul.f32 %v458, %v570
    %v640 = vadd.f32 %v638, %v639
    %v641 = vadd.f32 %v637, %v640
    %v642 = vmul.f32 %v469, %v581
    %v643 = vmul.f32 %v472, %v584
    %v644 = vadd.f32 %v642, %v643
    %v645 = vadd.f32 %v641, %v644
    %v646 = vmul.f32 %v483, %v595
    %v647 = vmul.f32 %v486, %v598
    %v648 = vadd.f32 %v646, %v647
    %v649 = vadd.f32 %v645, %v648
    %v650 = vmul.f32 %v497, %v609
    %v651 = vmul.f32 %v500, %v612
    %v652 = vadd.f32 %v650, %v651
    %v653 = vadd.f32 %v649, %v652
    %v654 = vmul.f32 %v511, %v623
    %v655 = vmul.f32 %v514, %v626
    %v656 = vadd.f32 %v654, %v655
    %v657 = vadd.f32 %v653, %v656
    %v658 = vmul.f32 %v413, %v469
    %v659 = vmul.f32 %v416, %v472
    %v660 = vadd.f32 %v658, %v659
    %v661 = vmul.f32 %v427, %v483
    %v662 = vmul.f32 %v430, %v486
    %v663 = vadd.f32 %v661, %v662
    %v664 = vadd.f32 %v660, %v663
    %v665 = vmul.f32 %v441, %v497
    %v666 = vmul.f32 %v444, %v500
    %v667 = vadd.f32 %v665, %v666
    %v668 = vadd.f32 %v664, %v667
    %v669 = vmul.f32 %v455, %v511
    %v670 = vmul.f32 %v458, %v514
    %v671 = vadd.f32 %v669, %v670
    %v672 = vadd.f32 %v668, %v671
    %v673 = vmul.f32 %v525, %v581
    %v674 = vmul.f32 %v528, %v584
    %v675 = vadd.f32 %v673, %v674
    %v676 = vadd.f32 %v672, %v675
    %v677 = vmul.f32 %v539, %v595
    %v678 = vmul.f32 %v542, %v598
    %v679 = vadd.f32 %v677, %v678
    %v680 = vadd.f32 %v676, %v679
    %v681 = vmul.f32 %v553, %v609
    %v682 = vmul.f32 %v556, %v612
    %v683 = vadd.f32 %v681, %v682
    %v684 = vadd.f32 %v680, %v683
    %v685 = vmul.f32 %v567, %v623
    %v686 = vmul.f32 %v570, %v626
    %v687 = vadd.f32 %v685, %v686
    %v688 = vadd.f32 %v684, %v687
    %v689 = vmul.f32 %v413, %v441
    %v690 = vmul.f32 %v416, %v444
    %v691 = vadd.f32 %v689, %v690
    %v692 = vmul.f32 %v427, %v455
    %v693 = vmul.f32 %v430, %v458
    %v694 = vadd.f32 %v692, %v693
    %v695 = vadd.f32 %v691, %v694
    %v696 = vmul.f32 %v469, %v497
    %v697 = vmul.f32 %v472, %v500
    %v698 = vadd.f32 %v696, %v697
    %v699 = vadd.f32 %v695, %v698
    %v700 = vmul.f32 %v483, %v511
    %v701 = vmul.f32 %v486, %v514
    %v702 = vadd.f32 %v700, %v701
    %v703 = vadd.f32 %v699, %v702
    %v704 = vmul.f32 %v525, %v553
    %v705 = vmul.f32 %v528, %v556
    %v706 = vadd.f32 %v704, %v705
    %v707 = vadd.f32 %v703, %v706
    %v708 = vmul.f32 %v539, %v567
    %v709 = vmul.f32 %v542, %v570
    %v710 = vadd.f32 %v708, %v709
    %v711 = vadd.f32 %v707, %v710
    %v712 = vmul.f32 %v581, %v609
    %v713 = vmul.f32 %v584, %v612
    %v714 = vadd.f32 %v712, %v713
    %v715 = vadd.f32 %v711, %v714
    %v716 = vmul.f32 %v595, %v623
    %v717 = vmul.f32 %v598, %v626
    %v718 = vadd.f32 %v716, %v717
    %v719 = vadd.f32 %v715, %v718
    %v720 = vmul.f32 %v413, %v427
    %v721 = vmul.f32 %v416, %v430
    %v722 = vadd.f32 %v720, %v721
    %v723 = vmul.f32 %v441, %v455
    %v724 = vmul.f32 %v444, %v458
    %v725 = vadd.f32 %v723, %v724
    %v726 = vadd.f32 %v722, %v725
    %v727 = vmul.f32 %v469, %v483
    %v728 = vmul.f32 %v472, %v486
    %v729 = vadd.f32 %v727, %v728
    %v730 = vadd.f32 %v726, %v729
    %v731 = vmul.f32 %v497, %v511
    %v732 = vmul.f32 %v500, %v514
    %v733 = vadd.f32 %v731, %v732
    %v734 = vadd.f32 %v730, %v733
    %v735 = vmul.f32 %v525, %v539
    %v736 = vmul.f32 %v528, %v542
    %v737 = vadd.f32 %v735, %v736
    %v738 = vadd.f32 %v734, %v737
    %v739 = vmul.f32 %v553, %v567
    %v740 = vmul.f32 %v556, %v570
    %v741 = vadd.f32 %v739, %v740
    %v742 = vadd.f32 %v738, %v741
    %v743 = vmul.f32 %v581, %v595
    %v744 = vmul.f32 %v584, %v598
    %v745 = vadd.f32 %v743, %v744
    %v746 = vadd.f32 %v742, %v745
    %v747 = vmul.f32 %v609, %v623
    %v748 = vmul.f32 %v612, %v626
    %v749 = vadd.f32 %v747, %v748
    %v750 = vadd.f32 %v746, %v749
    %v751 = vmul.f32 %v413, %v413
    %v752 = vmul.f32 %v416, %v416
    %v753 = vadd.f32 %v751, %v752
    %v754 = vmul.f32 %v427, %v427
    %v755 = vmul.f32 %v430, %v430
    %v756 = vadd.f32 %v754, %v755
    %v757 = vmul.f32 %v441, %v441
    %v758 = vmul.f32 %v444, %v444
    %v759 = vadd.f32 %v757, %v758
    %v760 = vmul.f32 %v455, %v455
    %v761 = vmul.f32 %v458, %v458
    %v762 = vadd.f32 %v760, %v761
    %v763 = vmul.f32 %v469, %v469
    %v764 = vmul.f32 %v472, %v472
    %v765 = vadd.f32 %v763, %v764
    %v766 = vmul.f32 %v483, %v483
    %v767 = vmul.f32 %v486, %v486
    %v768 = vadd.f32 %v766, %v767
    %v769 = vmul.f32 %v497, %v497
    %v770 = vmul.f32 %v500, %v500
    %v771 = vadd.f32 %v769, %v770
    %v772 = vmul.f32 %v511, %v511
    %v773 = vmul.f32 %v514, %v514
    %v774 = vadd.f32 %v772, %v773
    %v775 = vmul.f32 %v525, %v525
    %v776 = vmul.f32 %v528, %v528
    %v777 = vadd.f32 %v775, %v776
    %v778 = vmul.f32 %v539, %v539
    %v779 = vmul.f32 %v542, %v542
    %v780 = vadd.f32 %v778, %v779
    %v781 = vmul.f32 %v553, %v553
    %v782 = vmul.f32 %v556, %v556
    %v783 = vadd.f32 %v781, %v782
    %v784 = vmul.f32 %v567, %v567
    %v785 = vmul.f32 %v570, %v570
    %v786 = vadd.f32 %v784, %v785
    %v787 = vmul.f32 %v581, %v581
    %v788 = vmul.f32 %v584, %v584
    %v789 = vadd.f32 %v787, %v788
    %v790 = vmul.f32 %v595, %v595
    %v791 = vmul.f32 %v598, %v598
    %v792 = vadd.f32 %v790, %v791
    %v793 = vmul.f32 %v609, %v609
    %v794 = vmul.f32 %v612, %v612
    %v795 = vadd.f32 %v793, %v794
    %v796 = vmul.f32 %v623, %v623
    %v797 = vmul.f32 %v626, %v626
    %v798 = vadd.f32 %v796, %v797
    %v799 = vsub.f32 %v753, %v756
    %v800 = vsub.f32 %v759, %v762
    %v801 = vsub.f32 %v765, %v768
    %v802 = vsub.f32 %v771, %v774
    %v803 = vsub.f32 %v777, %v780
    %v804 = vsub.f32 %v783, %v786
    %v805 = vsub.f32 %v789, %v792
    %v806 = vsub.f32 %v795, %v798
    %v807 = vadd.f32 %v799, %v800
    %v808 = vadd.f32 %v807, %v801
    %v809 = vadd.f32 %v808, %v802
    %v810 = vadd.f32 %v809, %v803
    %v811 = vadd.f32 %v810, %v804
    %v812 = vadd.f32 %v811, %v805
    %v813 = vadd.f32 %v812, %v806
    %v814 = vadd.f32 %v753, %v756
    %v815 = vadd.f32 %v759, %v762
    %v816 = vadd.f32 %v765, %v768
    %v817 = vadd.f32 %v771, %v774
    %v818 = vadd.f32 %v777, %v780
    %v819 = vadd.f32 %v783, %v786
    %v820 = vadd.f32 %v789, %v792
    %v821 = vadd.f32 %v795, %v798
    %v822 = vsub.f32 %v814, %v815
    %v823 = vsub.f32 %v816, %v817
    %v824 = vsub.f32 %v818, %v819
    %v825 = vsub.f32 %v820, %v821
    %v826 = vadd.f32 %v822, %v823
    %v827 = vadd.f32 %v826, %v824
    %v828 = vadd.f32 %v827, %v825
    %v829 = vadd.f32 %v814, %v815
    %v830 = vadd.f32 %v816, %v817
    %v831 = vadd.f32 %v818, %v819
    %v832 = vadd.f32 %v820, %v821
    %v833 = vsub.f32 %v829, %v830
    %v834 = vsub.f32 %v831, %v832
    %v835 = vadd.f32 %v833, %v834
    %v836 = vadd.f32 %v829, %v830
    %v837 = vadd.f32 %v831, %v832
    %v838 = vsub.f32 %v836, %v837
    %v839 = vstv %s115
    %v840 = vmul.f32 %v839, %v838
    %v841 = vstv %s119
    %v842 = vmul.f32 %v841, %v657
    %v843 = vsub.f32 %v840, %v842
    %844 = vst [vmem:[#allocation12] sm:$0xff] %v843
    %v845 = vstv %s116
    %v846 = vmul.f32 %v845, %v835
    %v847 = vstv %s120
    %v848 = vmul.f32 %v847, %v688
    %v849 = vsub.f32 %v846, %v848
    %s850 = scalar_lea.vmem [#allocation12], %s128
    %851 = vst [vmem:[%s850] sm:$0xff] %v849
    %v852 = vstv %s117
    %v853 = vmul.f32 %v852, %v828
    %v854 = vstv %s121
    %v855 = vmul.f32 %v854, %v719
    %v856 = vsub.f32 %v853, %v855
    %s857 = scalar_lea.vmem [#allocation12], %s144
    %858 = vst [vmem:[%s857] sm:$0xff] %v856
    %v859 = vstv %s118
    %v860 = vmul.f32 %v859, %v813
    %v861 = vstv %s122
    %v862 = vmul.f32 %v861, %v750
    %v863 = vsub.f32 %v860, %v862
    %s864 = scalar_lea.vmem [#allocation12], %s162
    %865 = vst [vmem:[%s864] sm:$0xff] %v863
    // Predicated region
    $region42: #{tpu_custom_call.1} parent=1 // pred_check
      _
    $region43: #{tpu_custom_call.1} parent=1 // pred_check_branch
      %867 = sbr.rel (0) target = $region45
    $region44: #{tpu_custom_call.1} parent=1 // pred_region
      %s869 = ssub.s32 512, 512
      %870 = vsyncadd [#allocation4], %s869
      %s871 = sshll.u32 [#allocation12], 4
      %s872 = int_to_ptr.vmem [resolvable:$true] %s871
      %877 = dma.vmem_to_hbm [thread:$0]  %s872, 512, %s5, [#allocation4], 128, 128, 8
    $region45: #{tpu_custom_call.1} parent=1 // pred_fallthru
      _
    // Predicated region
    $region46: #{tpu_custom_call.1} parent=1 // pred_check
      _
    $region47: #{tpu_custom_call.1} parent=1 // pred_check_branch
      %879 = sbr.rel (0) target = $region49
    $region48: #{tpu_custom_call.1} parent=1 // pred_region
      %880 = dma.done [#allocation4], 512
    $region49: #{tpu_custom_call.1} parent=1 // pred_fallthru
      _
    %881 = vsyncpa [#allocation3], 1
    %882 = vsyncpa [#allocation4], 1
    %883 = vsyncpa [#allocation5], 1
    %884 = vsyncpa [#allocation8], 1
    %885 = vsyncpa [#allocation11], 1

</llo_original>
